<compile_context>
chip_gen: v6e
topology: v6e:2x2x1
jax: 0.10.0
libtpu: 0.0.40
codegen_flags: <defaults>
</compile_context>

<pallas_src>
import functools

import jax
import jax.numpy as jnp
import numpy as np
from jax.experimental import pallas as pl
from jax.experimental.pallas import tpu as pltpu


def _round_up(x, m):
    return (x + m - 1) // m * m


# ----------------------------------------------------------------------------
# Kernel 1: fused two-layer stem.  Per image (grid step):
#   y1 = relu(conv3x3(x)  * bn_scale1 + shift1)   (folded into w1/b1)
#   y2 = relu(conv3x3(y1) * bn_scale2 + shift2)   (folded into w2/b2)
#   out = sum over spatial positions of y2        -> (1, F)
# conv3x3 = 9 shifted dots on the (HW, C) flattened activation; zero padding is
# emulated with precomputed per-tap validity masks (batch-independent).
# ----------------------------------------------------------------------------
def _stem_kernel(x_ref, m_ref, w1_ref, b1_ref, w2_ref, b2_ref, s_ref, *, hh, ww):
    hw = hh * ww

    def conv3x3_relu(inp, w_r, b_r):
        acc = None
        for di in range(3):
            for dj in range(3):
                k = di * 3 + dj
                shift = (di - 1) * ww + (dj - 1)
                if shift == 0:
                    sh = inp                                    # center tap, all valid
                else:
                    s_amt = shift % hw
                    if s_amt == 0:
                        sh = inp * m_ref[k]
                    else:
                        sh = jnp.concatenate([inp[s_amt:], inp[:s_amt]],
                                             axis=0) * m_ref[k]
                t = jnp.dot(sh.astype(jnp.bfloat16),
                            w_r[k].astype(jnp.bfloat16),
                            preferred_element_type=jnp.float32)
                acc = t if acc is None else acc + t
        return jnp.maximum(acc + b_r[...], 0.0)

    y1 = conv3x3_relu(x_ref[...], w1_ref, b1_ref)               # (HW, F)
    y2 = conv3x3_relu(y1, w2_ref, b2_ref)                       # (HW, F)
    s_ref[...] = jnp.sum(y2, axis=0, keepdims=True)             # (1, F)


def stem_feature_sums(image_nchw, stem_params):
    """Returns per-image spatial sums of the final stem features: (N, F)."""
    n, cin, hh, ww = image_nchw.shape
    hw = hh * ww
    assert len(stem_params) == 2, "fused stem kernel assumes stem_num_layers=2"
    (w1, b1, sc1, sh1), (w2, b2, sc2, sh2) = stem_params
    f = w1.shape[1]

    def fold(wk, bk, sc, sh, cin_k):
        # Fold conv bias + eval-mode BN scale/shift into the conv weights.
        wf = wk.astype(jnp.float32) * sc.astype(jnp.float32)[None, :]
        bf = (bk.astype(jnp.float32) * sc.astype(jnp.float32)
              + sh.astype(jnp.float32))
        return wf.reshape(9, cin_k, -1), bf.reshape(1, -1)

    w1p, b1p = fold(w1, b1, sc1, sh1, cin)
    w2p, b2p = fold(w2, b2, sc2, sh2, f)

    # NCHW -> (N, H*W, Cin), spatial index p = h*W + w.
    x_flat = jnp.transpose(image_nchw, (0, 2, 3, 1)).reshape(n, hw, cin)
    x_flat = x_flat.astype(jnp.float32)

    # Zero-padding validity masks for the 9 taps (constants; built in numpy).
    hi, wi = np.meshgrid(np.arange(hh), np.arange(ww), indexing="ij")
    hi = hi.reshape(-1)
    wi = wi.reshape(-1)
    masks = np.zeros((9, hw, 1), np.float32)
    for di in range(3):
        for dj in range(3):
            ok = ((hi + di - 1 >= 0) & (hi + di - 1 < hh) &
                  (wi + dj - 1 >= 0) & (wi + dj - 1 < ww))
            masks[di * 3 + dj, :, 0] = ok.astype(np.float32)
    masks = jnp.asarray(masks)

    out = pl.pallas_call(
        functools.partial(_stem_kernel, hh=hh, ww=ww),
        out_shape=jax.ShapeDtypeStruct((n, 1, f), jnp.float32),
        grid=(n,),
        in_specs=[
            pl.BlockSpec((None, hw, cin), lambda i: (i, 0, 0)),   # image i
            pl.BlockSpec((9, hw, 1), lambda i: (0, 0, 0)),        # tap masks
            pl.BlockSpec((9, cin, f), lambda i: (0, 0, 0)),       # conv1 weights
            pl.BlockSpec((1, f), lambda i: (0, 0)),               # conv1 bias'
            pl.BlockSpec((9, f, f), lambda i: (0, 0, 0)),         # conv2 weights
            pl.BlockSpec((1, f), lambda i: (0, 0)),               # conv2 bias'
        ],
        out_specs=pl.BlockSpec((None, 1, f), lambda i: (i, 0, 0)),
        compiler_params=pltpu.CompilerParams(
            dimension_semantics=("parallel",)),
    )(x_flat, masks, w1p, b1p, w2p, b2p)
    return out.reshape(n, f)


# ----------------------------------------------------------------------------
# Kernel 2: batched relation-sum + classifier head.
#   relations = s_feat @ W_s + q @ W_q' + b'      (HW/HW^2/coords folded in)
#   hid       = relu(relations @ W1 + b1)
#   logits    = hid @ W2 + b2                     (128-lane padded)
# ----------------------------------------------------------------------------
def _head_kernel(s_ref, q_ref, ws_ref, wq_ref, rb_ref,
                 w1_ref, b1_ref, w2_ref, b2_ref, o_ref):
    rel = (jnp.dot(s_ref[...].astype(jnp.bfloat16), ws_ref[...],
                   preferred_element_type=jnp.float32)
           + jnp.dot(q_ref[...].astype(jnp.bfloat16), wq_ref[...],
                     preferred_element_type=jnp.float32)
           + rb_ref[...])
    hid = jnp.maximum(
        jnp.dot(rel.astype(jnp.bfloat16), w1_ref[...],
                preferred_element_type=jnp.float32) + b1_ref[...], 0.0)
    o_ref[...] = (jnp.dot(hid.astype(jnp.bfloat16), w2_ref[...],
                          preferred_element_type=jnp.float32)
                  + b2_ref[...]).astype(o_ref.dtype)


def relation_head(s_feat, ques, coords, hw, rel_w, rel_b, w1, b1, w2, b2):
    n, f = s_feat.shape
    q = ques.shape[-1]
    d = f + 2
    m = rel_w.shape[1]
    fc_dim = w1.shape[1]
    a = w2.shape[1]
    a_p = _round_up(a, 128)

    rel_w = rel_w.astype(jnp.float32)
    rel_b = rel_b.astype(jnp.float32)
    # x_i and x_j both multiply the same summed features, so their weights merge.
    wc = rel_w[:d] + rel_w[d:2 * d]                                # (D, M)
    w_s = (float(hw) * wc[:f]).astype(jnp.bfloat16)                # (F, M)
    w_q = (float(hw * hw) * rel_w[2 * d:]).astype(jnp.bfloat16)    # (Q, M)
    # Coords contribution to the pair sum is batch-independent -> fold into bias.
    c_sum = jnp.sum(coords.astype(jnp.float32), axis=0)            # (2,)
    b_rel = (float(hw * hw) * rel_b
             + float(hw) * (c_sum @ wc[f:d])).reshape(1, m)

    w1p = w1.astype(jnp.bfloat16)
    b1p = b1.astype(jnp.float32).reshape(1, fc_dim)
    w2p = w2.astype(jnp.float32)
    b2p = b2.astype(jnp.float32)
    if a_p != a:                                                   # lane-dense logits
        w2p = jnp.pad(w2p, ((0, 0), (0, a_p - a)))
        b2p = jnp.pad(b2p, ((0, a_p - a),))
    w2p = w2p.astype(jnp.bfloat16)
    b2p = b2p.reshape(1, a_p)

    # Batch N into full-sublane row blocks (>=8 rows live on the MXU).
    bn = min(_round_up(n, 8), 256)
    n_p = _round_up(n, bn)
    s_p = s_feat.astype(jnp.float32)
    q_p = ques.astype(jnp.float32)
    if n_p != n:
        s_p = jnp.pad(s_p, ((0, n_p - n), (0, 0)))
        q_p = jnp.pad(q_p, ((0, n_p - n), (0, 0)))

    out = pl.pallas_call(
        _head_kernel,
        out_shape=jax.ShapeDtypeStruct((n_p, a_p), jnp.float32),
        grid=(n_p // bn,),
        in_specs=[
            pl.BlockSpec((bn, f), lambda i: (i, 0)),               # s_feat block
            pl.BlockSpec((bn, q), lambda i: (i, 0)),               # ques block
            pl.BlockSpec((f, m), lambda i: (0, 0)),                # W_s (resident)
            pl.BlockSpec((q, m), lambda i: (0, 0)),                # W_q'
            pl.BlockSpec((1, m), lambda i: (0, 0)),                # relation bias'
            pl.BlockSpec((m, fc_dim), lambda i: (0, 0)),           # cls W1
            pl.BlockSpec((1, fc_dim), lambda i: (0, 0)),           # cls b1
            pl.BlockSpec((fc_dim, a_p), lambda i: (0, 0)),         # cls W2 (padded)
            pl.BlockSpec((1, a_p), lambda i: (0, 0)),              # cls b2 (padded)
        ],
        out_specs=pl.BlockSpec((bn, a_p), lambda i: (i, 0)),
        compiler_params=pltpu.CompilerParams(
            dimension_semantics=("parallel",)),
    )(s_p, q_p, w_s, w_q, b_rel, w1p, b1p, w2p, b2p)
    return out[:n, :a]


# ----------------------------------------------------------------------------
# Glue: coords, parameters, full forward, literal reference.
# ----------------------------------------------------------------------------
def im2col(x_nhwc, k, pad):
    n, h, w, c = x_nhwc.shape
    xp = jnp.pad(x_nhwc, ((0, 0), (pad, pad), (pad, pad), (0, 0)))
    cols = []
    for i in range(k):
        for j in range(k):
            cols.append(xp[:, i:i + h, j:j + w, :])
    patches = jnp.concatenate(cols, axis=-1)            # (N, H, W, k*k*C)
    return patches.reshape(n * h * w, k * k * c)


def make_coords(h, w):
    # Reproduces the (quirky) PyTorch coord construction exactly.
    x = jnp.linspace(-1.0, 1.0, w)
    y = jnp.linspace(-1.0, 1.0, h)
    xv = jnp.repeat(x[:, None], h, axis=1)              # (W, H)
    yv = jnp.repeat(y[None, :], w, axis=0)              # (W, H)
    return jnp.stack([xv, yv], axis=2).reshape(-1, 2)   # (W*H, 2)


def make_params(key, cin, stem_dim, rnn_dim, module_dim, fc_dim, num_answers):
    ks = iter(jax.random.split(key, 16))

    def winit(shape, fan_in):
        return (jax.random.normal(next(ks), shape, jnp.float32)
                / np.sqrt(float(fan_in))).astype(jnp.float32)

    def binit(nn_):
        return jax.random.normal(next(ks), (nn_,), jnp.float32) * 0.01

    params = {"stem": []}
    prev = cin
    for _ in range(2):                                   # stem_num_layers = 2
        w = winit((3, 3, prev, stem_dim), 9 * prev).reshape(9 * prev, stem_dim)
        b = binit(stem_dim)
        bn_scale = jnp.full((stem_dim,), 1.0 / np.sqrt(1.0 + 1e-5), jnp.float32)
        bn_shift = jnp.zeros((stem_dim,), jnp.float32)
        params["stem"].append((w, b, bn_scale, bn_shift))
        prev = stem_dim
    d_pair = 2 * (stem_dim + 2) + rnn_dim
    params["rel_w"] = winit((d_pair, module_dim), d_pair)
    params["rel_b"] = binit(module_dim)
    params["cls_w1"] = winit((module_dim, fc_dim), module_dim)
    params["cls_b1"] = binit(fc_dim)
    params["cls_w2"] = winit((fc_dim, num_answers), fc_dim)
    params["cls_b2"] = binit(num_answers)
    return params


def forward_pallas(image_nchw, ques, params, coords):
    n, cin, h, w = image_nchw.shape
    hw = h * w
    s_feat = stem_feature_sums(image_nchw, params["stem"])       # (N, F)
    return relation_head(s_feat, ques, coords, hw,
                         params["rel_w"], params["rel_b"],
                         params["cls_w1"], params["cls_b1"],
                         params["cls_w2"], params["cls_b2"])


def forward_reference(image_nchw, ques, params, coords):
    # Pure-JAX reference mirroring the PyTorch forward literally
    # (full (HW)^2 pair construction, no algebraic collapse).
    n, c, h, w = image_nchw.shape
    x = jnp.transpose(image_nchw, (0, 2, 3, 1))
    for (wk, bk, sk, tk) in params["stem"]:
        p = im2col(x, 3, 1)
        y = jnp.maximum((p @ wk + bk) * sk + tk, 0.0)
        x = y.reshape(n, h, w, -1)
    f = x.shape[-1]
    hw = h * w
    fc = x.reshape(n, hw, f)
    fc = jnp.concatenate(
        [fc, jnp.broadcast_to(coords[None], (n, hw, 2))], axis=2)
    d = f + 2
    x_i = jnp.broadcast_to(fc[:, None, :, :], (n, hw, hw, d))   # [n,a,b]=fc[n,b]
    x_j = jnp.broadcast_to(fc[:, :, None, :], (n, hw, hw, d))   # [n,a,b]=fc[n,a]
    pairs = jnp.concatenate([x_i, x_j], axis=3).reshape(n, hw * hw, 2 * d)
    q_rep = jnp.broadcast_to(ques[:, None, :], (n, hw * hw, ques.shape[-1]))
    pq = jnp.concatenate([pairs, q_rep], axis=2)
    rel = pq @ params["rel_w"] + params["rel_b"]
    relations = jnp.sum(rel, axis=1)
    hid = jnp.maximum(relations @ params["cls_w1"] + params["cls_b1"], 0.0)
    return hid @ params["cls_w2"] + params["cls_b2"]


if __name__ == "__main__":
    # Small shapes consistent with the module's forward.
    N, CIN, H, W = 2, 3, 8, 8
    STEM_DIM, RNN_DIM, MODULE_DIM, FC_DIM, NUM_ANSWERS = 6, 16, 32, 64, 10

    key = jax.random.PRNGKey(0)
    k_img, k_q, k_p = jax.random.split(key, 3)
    image = jax.random.normal(k_img, (N, CIN, H, W), jnp.float32)
    ques_vec = jax.random.normal(k_q, (N, RNN_DIM), jnp.float32)
    question = (None, ques_vec, None)                   # mirrors `_, ques, _ = question`

    params = make_params(k_p, CIN, STEM_DIM, RNN_DIM, MODULE_DIM, FC_DIM,
                         NUM_ANSWERS)
    coords = make_coords(H, W)

    _, ques, _ = question
    out = forward_pallas(image, ques, params, coords)
    out = jax.block_until_ready(out)
    assert out.shape == (N, NUM_ANSWERS)

    with jax.default_matmul_precision("float32"):
        ref = jax.block_until_ready(forward_reference(image, ques, params, coords))

    ref_np = np.asarray(ref)
    np.testing.assert_allclose(
        np.asarray(out), ref_np,
        rtol=2e-2, atol=2e-2 * float(np.max(np.abs(ref_np))) + 1e-4)

    print("KERNEL_OK")
</pallas_src>

<mosaic_0001>
module attributes {stable_mosaic.version = 11 : i64} {
  func.func @_stem_kernel(%arg0: i32, %arg1: memref<1x64x3xf32, #tpu.memory_space<vmem>>, %arg2: memref<9x64x1xf32, #tpu.memory_space<vmem>>, %arg3: memref<9x3x6xf32, #tpu.memory_space<vmem>>, %arg4: memref<1x6xf32, #tpu.memory_space<vmem>>, %arg5: memref<9x6x6xf32, #tpu.memory_space<vmem>>, %arg6: memref<1x6xf32, #tpu.memory_space<vmem>>, %arg7: memref<1x1x6xf32, #tpu.memory_space<vmem>>) attributes {dimension_semantics = [#tpu.dimension_semantics<parallel>], iteration_bounds = array<i64: 2>, scalar_prefetch = 0 : i64, scratch_operands = 0 : i64, tpu.core_type = #tpu.core_type<tc>, window_params = [{transform_indices = @transform_0, window_bounds = array<i64: 1, 64, 3>}, {pipeline_mode = #tpu.pipeline_mode<synchronous>, transform_indices = @transform_1, window_bounds = array<i64: 9, 64, 1>}, {pipeline_mode = #tpu.pipeline_mode<synchronous>, transform_indices = @transform_2, window_bounds = array<i64: 9, 3, 6>}, {pipeline_mode = #tpu.pipeline_mode<synchronous>, transform_indices = @transform_3, window_bounds = array<i64: 1, 6>}, {pipeline_mode = #tpu.pipeline_mode<synchronous>, transform_indices = @transform_4, window_bounds = array<i64: 9, 6, 6>}, {pipeline_mode = #tpu.pipeline_mode<synchronous>, transform_indices = @transform_5, window_bounds = array<i64: 1, 6>}, {transform_indices = @transform_6, window_bounds = array<i64: 1, 1, 6>}]} {
    %c0 = arith.constant 0 : index
    %c0_0 = arith.constant 0 : index
    %c0_1 = arith.constant 0 : index
    %0 = vector.load %arg1[%c0, %c0_0, %c0_1] : memref<1x64x3xf32, #tpu.memory_space<vmem>>, vector<1x64x3xf32>
    %1 = vector.shape_cast %0 : vector<1x64x3xf32> to vector<64x3xf32>
    %2 = vector.extract_strided_slice %1 {offsets = [55, 0], sizes = [9, 3], strides = [1, 1]} : vector<64x3xf32> to vector<9x3xf32>
    %3 = vector.extract_strided_slice %1 {offsets = [0, 0], sizes = [55, 3], strides = [1, 1]} : vector<64x3xf32> to vector<55x3xf32>
    %4 = tpu.concatenate %2, %3 in 0 : vector<9x3xf32>, vector<55x3xf32> -> vector<64x3xf32>
    %c0_2 = arith.constant 0 : index
    %c0_3 = arith.constant 0 : index
    %c0_4 = arith.constant 0 : index
    %5 = vector.load %arg2[%c0_2, %c0_3, %c0_4] : memref<9x64x1xf32, #tpu.memory_space<vmem>>, vector<1x64x1xf32>
    %6 = vector.shape_cast %5 : vector<1x64x1xf32> to vector<64x1xf32>
    %7 = vector.broadcast %6 : vector<64x1xf32> to vector<64x3xf32>
    %8 = arith.mulf %4, %7 : vector<64x3xf32>
    %9 = arith.truncf %8 : vector<64x3xf32> to vector<64x3xbf16>
    %c0_5 = arith.constant 0 : index
    %c0_6 = arith.constant 0 : index
    %c0_7 = arith.constant 0 : index
    %10 = vector.load %arg3[%c0_5, %c0_6, %c0_7] : memref<9x3x6xf32, #tpu.memory_space<vmem>>, vector<1x3x6xf32>
    %11 = vector.shape_cast %10 : vector<1x3x6xf32> to vector<3x6xf32>
    %12 = arith.truncf %11 : vector<3x6xf32> to vector<3x6xbf16>
    %cst = arith.constant dense<0.000000e+00> : vector<64x6xf32>
    %13 = tpu.matmul %9, %12, %cst {dimension_numbers = #tpu.dot_dimension_numbers<[1], [0], [0], [1], [0, 0, 1, 1], [], []>} : vector<64x3xbf16>, vector<3x6xbf16>, vector<64x6xf32> -> vector<64x6xf32>
    %14 = vector.extract_strided_slice %1 {offsets = [56, 0], sizes = [8, 3], strides = [1, 1]} : vector<64x3xf32> to vector<8x3xf32>
    %15 = vector.extract_strided_slice %1 {offsets = [0, 0], sizes = [56, 3], strides = [1, 1]} : vector<64x3xf32> to vector<56x3xf32>
    %16 = tpu.concatenate %14, %15 in 0 : vector<8x3xf32>, vector<56x3xf32> -> vector<64x3xf32>
    %c1 = arith.constant 1 : index
    %c0_8 = arith.constant 0 : index
    %c0_9 = arith.constant 0 : index
    %17 = vector.load %arg2[%c1, %c0_8, %c0_9] : memref<9x64x1xf32, #tpu.memory_space<vmem>>, vector<1x64x1xf32>
    %18 = vector.shape_cast %17 : vector<1x64x1xf32> to vector<64x1xf32>
    %19 = vector.broadcast %18 : vector<64x1xf32> to vector<64x3xf32>
    %20 = arith.mulf %16, %19 : vector<64x3xf32>
    %21 = arith.truncf %20 : vector<64x3xf32> to vector<64x3xbf16>
    %c1_10 = arith.constant 1 : index
    %c0_11 = arith.constant 0 : index
    %c0_12 = arith.constant 0 : index
    %22 = vector.load %arg3[%c1_10, %c0_11, %c0_12] : memref<9x3x6xf32, #tpu.memory_space<vmem>>, vector<1x3x6xf32>
    %23 = vector.shape_cast %22 : vector<1x3x6xf32> to vector<3x6xf32>
    %24 = arith.truncf %23 : vector<3x6xf32> to vector<3x6xbf16>
    %cst_13 = arith.constant dense<0.000000e+00> : vector<64x6xf32>
    %25 = tpu.matmul %21, %24, %cst_13 {dimension_numbers = #tpu.dot_dimension_numbers<[1], [0], [0], [1], [0, 0, 1, 1], [], []>} : vector<64x3xbf16>, vector<3x6xbf16>, vector<64x6xf32> -> vector<64x6xf32>
    %26 = arith.addf %13, %25 : vector<64x6xf32>
    %27 = vector.extract_strided_slice %1 {offsets = [57, 0], sizes = [7, 3], strides = [1, 1]} : vector<64x3xf32> to vector<7x3xf32>
    %28 = vector.extract_strided_slice %1 {offsets = [0, 0], sizes = [57, 3], strides = [1, 1]} : vector<64x3xf32> to vector<57x3xf32>
    %29 = tpu.concatenate %27, %28 in 0 : vector<7x3xf32>, vector<57x3xf32> -> vector<64x3xf32>
    %c2 = arith.constant 2 : index
    %c0_14 = arith.constant 0 : index
    %c0_15 = arith.constant 0 : index
    %30 = vector.load %arg2[%c2, %c0_14, %c0_15] : memref<9x64x1xf32, #tpu.memory_space<vmem>>, vector<1x64x1xf32>
    %31 = vector.shape_cast %30 : vector<1x64x1xf32> to vector<64x1xf32>
    %32 = vector.broadcast %31 : vector<64x1xf32> to vector<64x3xf32>
    %33 = arith.mulf %29, %32 : vector<64x3xf32>
    %34 = arith.truncf %33 : vector<64x3xf32> to vector<64x3xbf16>
    %c2_16 = arith.constant 2 : index
    %c0_17 = arith.constant 0 : index
    %c0_18 = arith.constant 0 : index
    %35 = vector.load %arg3[%c2_16, %c0_17, %c0_18] : memref<9x3x6xf32, #tpu.memory_space<vmem>>, vector<1x3x6xf32>
    %36 = vector.shape_cast %35 : vector<1x3x6xf32> to vector<3x6xf32>
    %37 = arith.truncf %36 : vector<3x6xf32> to vector<3x6xbf16>
    %cst_19 = arith.constant dense<0.000000e+00> : vector<64x6xf32>
    %38 = tpu.matmul %34, %37, %cst_19 {dimension_numbers = #tpu.dot_dimension_numbers<[1], [0], [0], [1], [0, 0, 1, 1], [], []>} : vector<64x3xbf16>, vector<3x6xbf16>, vector<64x6xf32> -> vector<64x6xf32>
    %39 = arith.addf %26, %38 : vector<64x6xf32>
    %40 = vector.extract_strided_slice %1 {offsets = [63, 0], sizes = [1, 3], strides = [1, 1]} : vector<64x3xf32> to vector<1x3xf32>
    %41 = vector.extract_strided_slice %1 {offsets = [0, 0], sizes = [63, 3], strides = [1, 1]} : vector<64x3xf32> to vector<63x3xf32>
    %42 = tpu.concatenate %40, %41 in 0 : vector<1x3xf32>, vector<63x3xf32> -> vector<64x3xf32>
    %c3 = arith.constant 3 : index
    %c0_20 = arith.constant 0 : index
    %c0_21 = arith.constant 0 : index
    %43 = vector.load %arg2[%c3, %c0_20, %c0_21] : memref<9x64x1xf32, #tpu.memory_space<vmem>>, vector<1x64x1xf32>
    %44 = vector.shape_cast %43 : vector<1x64x1xf32> to vector<64x1xf32>
    %45 = vector.broadcast %44 : vector<64x1xf32> to vector<64x3xf32>
    %46 = arith.mulf %42, %45 : vector<64x3xf32>
    %47 = arith.truncf %46 : vector<64x3xf32> to vector<64x3xbf16>
    %c3_22 = arith.constant 3 : index
    %c0_23 = arith.constant 0 : index
    %c0_24 = arith.constant 0 : index
    %48 = vector.load %arg3[%c3_22, %c0_23, %c0_24] : memref<9x3x6xf32, #tpu.memory_space<vmem>>, vector<1x3x6xf32>
    %49 = vector.shape_cast %48 : vector<1x3x6xf32> to vector<3x6xf32>
    %50 = arith.truncf %49 : vector<3x6xf32> to vector<3x6xbf16>
    %cst_25 = arith.constant dense<0.000000e+00> : vector<64x6xf32>
    %51 = tpu.matmul %47, %50, %cst_25 {dimension_numbers = #tpu.dot_dimension_numbers<[1], [0], [0], [1], [0, 0, 1, 1], [], []>} : vector<64x3xbf16>, vector<3x6xbf16>, vector<64x6xf32> -> vector<64x6xf32>
    %52 = arith.addf %39, %51 : vector<64x6xf32>
    %53 = arith.truncf %1 : vector<64x3xf32> to vector<64x3xbf16>
    %c4 = arith.constant 4 : index
    %c0_26 = arith.constant 0 : index
    %c0_27 = arith.constant 0 : index
    %54 = vector.load %arg3[%c4, %c0_26, %c0_27] : memref<9x3x6xf32, #tpu.memory_space<vmem>>, vector<1x3x6xf32>
    %55 = vector.shape_cast %54 : vector<1x3x6xf32> to vector<3x6xf32>
    %56 = arith.truncf %55 : vector<3x6xf32> to vector<3x6xbf16>
    %cst_28 = arith.constant dense<0.000000e+00> : vector<64x6xf32>
    %57 = tpu.matmul %53, %56, %cst_28 {dimension_numbers = #tpu.dot_dimension_numbers<[1], [0], [0], [1], [0, 0, 1, 1], [], []>} : vector<64x3xbf16>, vector<3x6xbf16>, vector<64x6xf32> -> vector<64x6xf32>
    %58 = arith.addf %52, %57 : vector<64x6xf32>
    %59 = vector.extract_strided_slice %1 {offsets = [1, 0], sizes = [63, 3], strides = [1, 1]} : vector<64x3xf32> to vector<63x3xf32>
    %60 = vector.extract_strided_slice %1 {offsets = [0, 0], sizes = [1, 3], strides = [1, 1]} : vector<64x3xf32> to vector<1x3xf32>
    %61 = tpu.concatenate %59, %60 in 0 : vector<63x3xf32>, vector<1x3xf32> -> vector<64x3xf32>
    %c5 = arith.constant 5 : index
    %c0_29 = arith.constant 0 : index
    %c0_30 = arith.constant 0 : index
    %62 = vector.load %arg2[%c5, %c0_29, %c0_30] : memref<9x64x1xf32, #tpu.memory_space<vmem>>, vector<1x64x1xf32>
    %63 = vector.shape_cast %62 : vector<1x64x1xf32> to vector<64x1xf32>
    %64 = vector.broadcast %63 : vector<64x1xf32> to vector<64x3xf32>
    %65 = arith.mulf %61, %64 : vector<64x3xf32>
    %66 = arith.truncf %65 : vector<64x3xf32> to vector<64x3xbf16>
    %c5_31 = arith.constant 5 : index
    %c0_32 = arith.constant 0 : index
    %c0_33 = arith.constant 0 : index
    %67 = vector.load %arg3[%c5_31, %c0_32, %c0_33] : memref<9x3x6xf32, #tpu.memory_space<vmem>>, vector<1x3x6xf32>
    %68 = vector.shape_cast %67 : vector<1x3x6xf32> to vector<3x6xf32>
    %69 = arith.truncf %68 : vector<3x6xf32> to vector<3x6xbf16>
    %cst_34 = arith.constant dense<0.000000e+00> : vector<64x6xf32>
    %70 = tpu.matmul %66, %69, %cst_34 {dimension_numbers = #tpu.dot_dimension_numbers<[1], [0], [0], [1], [0, 0, 1, 1], [], []>} : vector<64x3xbf16>, vector<3x6xbf16>, vector<64x6xf32> -> vector<64x6xf32>
    %71 = arith.addf %58, %70 : vector<64x6xf32>
    %72 = vector.extract_strided_slice %1 {offsets = [7, 0], sizes = [57, 3], strides = [1, 1]} : vector<64x3xf32> to vector<57x3xf32>
    %73 = vector.extract_strided_slice %1 {offsets = [0, 0], sizes = [7, 3], strides = [1, 1]} : vector<64x3xf32> to vector<7x3xf32>
    %74 = tpu.concatenate %72, %73 in 0 : vector<57x3xf32>, vector<7x3xf32> -> vector<64x3xf32>
    %c6 = arith.constant 6 : index
    %c0_35 = arith.constant 0 : index
    %c0_36 = arith.constant 0 : index
    %75 = vector.load %arg2[%c6, %c0_35, %c0_36] : memref<9x64x1xf32, #tpu.memory_space<vmem>>, vector<1x64x1xf32>
    %76 = vector.shape_cast %75 : vector<1x64x1xf32> to vector<64x1xf32>
    %77 = vector.broadcast %76 : vector<64x1xf32> to vector<64x3xf32>
    %78 = arith.mulf %74, %77 : vector<64x3xf32>
    %79 = arith.truncf %78 : vector<64x3xf32> to vector<64x3xbf16>
    %c6_37 = arith.constant 6 : index
    %c0_38 = arith.constant 0 : index
    %c0_39 = arith.constant 0 : index
    %80 = vector.load %arg3[%c6_37, %c0_38, %c0_39] : memref<9x3x6xf32, #tpu.memory_space<vmem>>, vector<1x3x6xf32>
    %81 = vector.shape_cast %80 : vector<1x3x6xf32> to vector<3x6xf32>
    %82 = arith.truncf %81 : vector<3x6xf32> to vector<3x6xbf16>
    %cst_40 = arith.constant dense<0.000000e+00> : vector<64x6xf32>
    %83 = tpu.matmul %79, %82, %cst_40 {dimension_numbers = #tpu.dot_dimension_numbers<[1], [0], [0], [1], [0, 0, 1, 1], [], []>} : vector<64x3xbf16>, vector<3x6xbf16>, vector<64x6xf32> -> vector<64x6xf32>
    %84 = arith.addf %71, %83 : vector<64x6xf32>
    %85 = vector.extract_strided_slice %1 {offsets = [8, 0], sizes = [56, 3], strides = [1, 1]} : vector<64x3xf32> to vector<56x3xf32>
    %86 = vector.extract_strided_slice %1 {offsets = [0, 0], sizes = [8, 3], strides = [1, 1]} : vector<64x3xf32> to vector<8x3xf32>
    %87 = tpu.concatenate %85, %86 in 0 : vector<56x3xf32>, vector<8x3xf32> -> vector<64x3xf32>
    %c7 = arith.constant 7 : index
    %c0_41 = arith.constant 0 : index
    %c0_42 = arith.constant 0 : index
    %88 = vector.load %arg2[%c7, %c0_41, %c0_42] : memref<9x64x1xf32, #tpu.memory_space<vmem>>, vector<1x64x1xf32>
    %89 = vector.shape_cast %88 : vector<1x64x1xf32> to vector<64x1xf32>
    %90 = vector.broadcast %89 : vector<64x1xf32> to vector<64x3xf32>
    %91 = arith.mulf %87, %90 : vector<64x3xf32>
    %92 = arith.truncf %91 : vector<64x3xf32> to vector<64x3xbf16>
    %c7_43 = arith.constant 7 : index
    %c0_44 = arith.constant 0 : index
    %c0_45 = arith.constant 0 : index
    %93 = vector.load %arg3[%c7_43, %c0_44, %c0_45] : memref<9x3x6xf32, #tpu.memory_space<vmem>>, vector<1x3x6xf32>
    %94 = vector.shape_cast %93 : vector<1x3x6xf32> to vector<3x6xf32>
    %95 = arith.truncf %94 : vector<3x6xf32> to vector<3x6xbf16>
    %cst_46 = arith.constant dense<0.000000e+00> : vector<64x6xf32>
    %96 = tpu.matmul %92, %95, %cst_46 {dimension_numbers = #tpu.dot_dimension_numbers<[1], [0], [0], [1], [0, 0, 1, 1], [], []>} : vector<64x3xbf16>, vector<3x6xbf16>, vector<64x6xf32> -> vector<64x6xf32>
    %97 = arith.addf %84, %96 : vector<64x6xf32>
    %98 = vector.extract_strided_slice %1 {offsets = [9, 0], sizes = [55, 3], strides = [1, 1]} : vector<64x3xf32> to vector<55x3xf32>
    %99 = vector.extract_strided_slice %1 {offsets = [0, 0], sizes = [9, 3], strides = [1, 1]} : vector<64x3xf32> to vector<9x3xf32>
    %100 = tpu.concatenate %98, %99 in 0 : vector<55x3xf32>, vector<9x3xf32> -> vector<64x3xf32>
    %c8 = arith.constant 8 : index
    %c0_47 = arith.constant 0 : index
    %c0_48 = arith.constant 0 : index
    %101 = vector.load %arg2[%c8, %c0_47, %c0_48] : memref<9x64x1xf32, #tpu.memory_space<vmem>>, vector<1x64x1xf32>
    %102 = vector.shape_cast %101 : vector<1x64x1xf32> to vector<64x1xf32>
    %103 = vector.broadcast %102 : vector<64x1xf32> to vector<64x3xf32>
    %104 = arith.mulf %100, %103 : vector<64x3xf32>
    %105 = arith.truncf %104 : vector<64x3xf32> to vector<64x3xbf16>
    %c8_49 = arith.constant 8 : index
    %c0_50 = arith.constant 0 : index
    %c0_51 = arith.constant 0 : index
    %106 = vector.load %arg3[%c8_49, %c0_50, %c0_51] : memref<9x3x6xf32, #tpu.memory_space<vmem>>, vector<1x3x6xf32>
    %107 = vector.shape_cast %106 : vector<1x3x6xf32> to vector<3x6xf32>
    %108 = arith.truncf %107 : vector<3x6xf32> to vector<3x6xbf16>
    %cst_52 = arith.constant dense<0.000000e+00> : vector<64x6xf32>
    %109 = tpu.matmul %105, %108, %cst_52 {dimension_numbers = #tpu.dot_dimension_numbers<[1], [0], [0], [1], [0, 0, 1, 1], [], []>} : vector<64x3xbf16>, vector<3x6xbf16>, vector<64x6xf32> -> vector<64x6xf32>
    %110 = arith.addf %97, %109 : vector<64x6xf32>
    %c0_53 = arith.constant 0 : index
    %c0_54 = arith.constant 0 : index
    %111 = vector.load %arg4[%c0_53, %c0_54] : memref<1x6xf32, #tpu.memory_space<vmem>>, vector<1x6xf32>
    %112 = vector.broadcast %111 : vector<1x6xf32> to vector<64x6xf32>
    %113 = arith.addf %110, %112 : vector<64x6xf32>
    %cst_55 = arith.constant 0.000000e+00 : f32
    %114 = vector.broadcast %cst_55 : f32 to vector<64x6xf32>
    %115 = arith.maximumf %113, %114 : vector<64x6xf32>
    %116 = vector.extract_strided_slice %115 {offsets = [55, 0], sizes = [9, 6], strides = [1, 1]} : vector<64x6xf32> to vector<9x6xf32>
    %117 = vector.extract_strided_slice %115 {offsets = [0, 0], sizes = [55, 6], strides = [1, 1]} : vector<64x6xf32> to vector<55x6xf32>
    %118 = tpu.concatenate %116, %117 in 0 : vector<9x6xf32>, vector<55x6xf32> -> vector<64x6xf32>
    %c0_56 = arith.constant 0 : index
    %c0_57 = arith.constant 0 : index
    %c0_58 = arith.constant 0 : index
    %119 = vector.load %arg2[%c0_56, %c0_57, %c0_58] : memref<9x64x1xf32, #tpu.memory_space<vmem>>, vector<1x64x1xf32>
    %120 = vector.shape_cast %119 : vector<1x64x1xf32> to vector<64x1xf32>
    %121 = vector.broadcast %120 : vector<64x1xf32> to vector<64x6xf32>
    %122 = arith.mulf %118, %121 : vector<64x6xf32>
    %123 = arith.truncf %122 : vector<64x6xf32> to vector<64x6xbf16>
    %c0_59 = arith.constant 0 : index
    %c0_60 = arith.constant 0 : index
    %c0_61 = arith.constant 0 : index
    %124 = vector.load %arg5[%c0_59, %c0_60, %c0_61] : memref<9x6x6xf32, #tpu.memory_space<vmem>>, vector<1x6x6xf32>
    %125 = vector.shape_cast %124 : vector<1x6x6xf32> to vector<6x6xf32>
    %126 = arith.truncf %125 : vector<6x6xf32> to vector<6x6xbf16>
    %cst_62 = arith.constant dense<0.000000e+00> : vector<64x6xf32>
    %127 = tpu.matmul %123, %126, %cst_62 {dimension_numbers = #tpu.dot_dimension_numbers<[1], [0], [0], [1], [0, 0, 1, 1], [], []>} : vector<64x6xbf16>, vector<6x6xbf16>, vector<64x6xf32> -> vector<64x6xf32>
    %128 = vector.extract_strided_slice %115 {offsets = [56, 0], sizes = [8, 6], strides = [1, 1]} : vector<64x6xf32> to vector<8x6xf32>
    %129 = vector.extract_strided_slice %115 {offsets = [0, 0], sizes = [56, 6], strides = [1, 1]} : vector<64x6xf32> to vector<56x6xf32>
    %130 = tpu.concatenate %128, %129 in 0 : vector<8x6xf32>, vector<56x6xf32> -> vector<64x6xf32>
    %c1_63 = arith.constant 1 : index
    %c0_64 = arith.constant 0 : index
    %c0_65 = arith.constant 0 : index
    %131 = vector.load %arg2[%c1_63, %c0_64, %c0_65] : memref<9x64x1xf32, #tpu.memory_space<vmem>>, vector<1x64x1xf32>
    %132 = vector.shape_cast %131 : vector<1x64x1xf32> to vector<64x1xf32>
    %133 = vector.broadcast %132 : vector<64x1xf32> to vector<64x6xf32>
    %134 = arith.mulf %130, %133 : vector<64x6xf32>
    %135 = arith.truncf %134 : vector<64x6xf32> to vector<64x6xbf16>
    %c1_66 = arith.constant 1 : index
    %c0_67 = arith.constant 0 : index
    %c0_68 = arith.constant 0 : index
    %136 = vector.load %arg5[%c1_66, %c0_67, %c0_68] : memref<9x6x6xf32, #tpu.memory_space<vmem>>, vector<1x6x6xf32>
    %137 = vector.shape_cast %136 : vector<1x6x6xf32> to vector<6x6xf32>
    %138 = arith.truncf %137 : vector<6x6xf32> to vector<6x6xbf16>
    %cst_69 = arith.constant dense<0.000000e+00> : vector<64x6xf32>
    %139 = tpu.matmul %135, %138, %cst_69 {dimension_numbers = #tpu.dot_dimension_numbers<[1], [0], [0], [1], [0, 0, 1, 1], [], []>} : vector<64x6xbf16>, vector<6x6xbf16>, vector<64x6xf32> -> vector<64x6xf32>
    %140 = arith.addf %127, %139 : vector<64x6xf32>
    %141 = vector.extract_strided_slice %115 {offsets = [57, 0], sizes = [7, 6], strides = [1, 1]} : vector<64x6xf32> to vector<7x6xf32>
    %142 = vector.extract_strided_slice %115 {offsets = [0, 0], sizes = [57, 6], strides = [1, 1]} : vector<64x6xf32> to vector<57x6xf32>
    %143 = tpu.concatenate %141, %142 in 0 : vector<7x6xf32>, vector<57x6xf32> -> vector<64x6xf32>
    %c2_70 = arith.constant 2 : index
    %c0_71 = arith.constant 0 : index
    %c0_72 = arith.constant 0 : index
    %144 = vector.load %arg2[%c2_70, %c0_71, %c0_72] : memref<9x64x1xf32, #tpu.memory_space<vmem>>, vector<1x64x1xf32>
    %145 = vector.shape_cast %144 : vector<1x64x1xf32> to vector<64x1xf32>
    %146 = vector.broadcast %145 : vector<64x1xf32> to vector<64x6xf32>
    %147 = arith.mulf %143, %146 : vector<64x6xf32>
    %148 = arith.truncf %147 : vector<64x6xf32> to vector<64x6xbf16>
    %c2_73 = arith.constant 2 : index
    %c0_74 = arith.constant 0 : index
    %c0_75 = arith.constant 0 : index
    %149 = vector.load %arg5[%c2_73, %c0_74, %c0_75] : memref<9x6x6xf32, #tpu.memory_space<vmem>>, vector<1x6x6xf32>
    %150 = vector.shape_cast %149 : vector<1x6x6xf32> to vector<6x6xf32>
    %151 = arith.truncf %150 : vector<6x6xf32> to vector<6x6xbf16>
    %cst_76 = arith.constant dense<0.000000e+00> : vector<64x6xf32>
    %152 = tpu.matmul %148, %151, %cst_76 {dimension_numbers = #tpu.dot_dimension_numbers<[1], [0], [0], [1], [0, 0, 1, 1], [], []>} : vector<64x6xbf16>, vector<6x6xbf16>, vector<64x6xf32> -> vector<64x6xf32>
    %153 = arith.addf %140, %152 : vector<64x6xf32>
    %154 = vector.extract_strided_slice %115 {offsets = [63, 0], sizes = [1, 6], strides = [1, 1]} : vector<64x6xf32> to vector<1x6xf32>
    %155 = vector.extract_strided_slice %115 {offsets = [0, 0], sizes = [63, 6], strides = [1, 1]} : vector<64x6xf32> to vector<63x6xf32>
    %156 = tpu.concatenate %154, %155 in 0 : vector<1x6xf32>, vector<63x6xf32> -> vector<64x6xf32>
    %c3_77 = arith.constant 3 : index
    %c0_78 = arith.constant 0 : index
    %c0_79 = arith.constant 0 : index
    %157 = vector.load %arg2[%c3_77, %c0_78, %c0_79] : memref<9x64x1xf32, #tpu.memory_space<vmem>>, vector<1x64x1xf32>
    %158 = vector.shape_cast %157 : vector<1x64x1xf32> to vector<64x1xf32>
    %159 = vector.broadcast %158 : vector<64x1xf32> to vector<64x6xf32>
    %160 = arith.mulf %156, %159 : vector<64x6xf32>
    %161 = arith.truncf %160 : vector<64x6xf32> to vector<64x6xbf16>
    %c3_80 = arith.constant 3 : index
    %c0_81 = arith.constant 0 : index
    %c0_82 = arith.constant 0 : index
    %162 = vector.load %arg5[%c3_80, %c0_81, %c0_82] : memref<9x6x6xf32, #tpu.memory_space<vmem>>, vector<1x6x6xf32>
    %163 = vector.shape_cast %162 : vector<1x6x6xf32> to vector<6x6xf32>
    %164 = arith.truncf %163 : vector<6x6xf32> to vector<6x6xbf16>
    %cst_83 = arith.constant dense<0.000000e+00> : vector<64x6xf32>
    %165 = tpu.matmul %161, %164, %cst_83 {dimension_numbers = #tpu.dot_dimension_numbers<[1], [0], [0], [1], [0, 0, 1, 1], [], []>} : vector<64x6xbf16>, vector<6x6xbf16>, vector<64x6xf32> -> vector<64x6xf32>
    %166 = arith.addf %153, %165 : vector<64x6xf32>
    %167 = arith.truncf %115 : vector<64x6xf32> to vector<64x6xbf16>
    %c4_84 = arith.constant 4 : index
    %c0_85 = arith.constant 0 : index
    %c0_86 = arith.constant 0 : index
    %168 = vector.load %arg5[%c4_84, %c0_85, %c0_86] : memref<9x6x6xf32, #tpu.memory_space<vmem>>, vector<1x6x6xf32>
    %169 = vector.shape_cast %168 : vector<1x6x6xf32> to vector<6x6xf32>
    %170 = arith.truncf %169 : vector<6x6xf32> to vector<6x6xbf16>
    %cst_87 = arith.constant dense<0.000000e+00> : vector<64x6xf32>
    %171 = tpu.matmul %167, %170, %cst_87 {dimension_numbers = #tpu.dot_dimension_numbers<[1], [0], [0], [1], [0, 0, 1, 1], [], []>} : vector<64x6xbf16>, vector<6x6xbf16>, vector<64x6xf32> -> vector<64x6xf32>
    %172 = arith.addf %166, %171 : vector<64x6xf32>
    %173 = vector.extract_strided_slice %115 {offsets = [1, 0], sizes = [63, 6], strides = [1, 1]} : vector<64x6xf32> to vector<63x6xf32>
    %174 = vector.extract_strided_slice %115 {offsets = [0, 0], sizes = [1, 6], strides = [1, 1]} : vector<64x6xf32> to vector<1x6xf32>
    %175 = tpu.concatenate %173, %174 in 0 : vector<63x6xf32>, vector<1x6xf32> -> vector<64x6xf32>
    %c5_88 = arith.constant 5 : index
    %c0_89 = arith.constant 0 : index
    %c0_90 = arith.constant 0 : index
    %176 = vector.load %arg2[%c5_88, %c0_89, %c0_90] : memref<9x64x1xf32, #tpu.memory_space<vmem>>, vector<1x64x1xf32>
    %177 = vector.shape_cast %176 : vector<1x64x1xf32> to vector<64x1xf32>
    %178 = vector.broadcast %177 : vector<64x1xf32> to vector<64x6xf32>
    %179 = arith.mulf %175, %178 : vector<64x6xf32>
    %180 = arith.truncf %179 : vector<64x6xf32> to vector<64x6xbf16>
    %c5_91 = arith.constant 5 : index
    %c0_92 = arith.constant 0 : index
    %c0_93 = arith.constant 0 : index
    %181 = vector.load %arg5[%c5_91, %c0_92, %c0_93] : memref<9x6x6xf32, #tpu.memory_space<vmem>>, vector<1x6x6xf32>
    %182 = vector.shape_cast %181 : vector<1x6x6xf32> to vector<6x6xf32>
    %183 = arith.truncf %182 : vector<6x6xf32> to vector<6x6xbf16>
    %cst_94 = arith.constant dense<0.000000e+00> : vector<64x6xf32>
    %184 = tpu.matmul %180, %183, %cst_94 {dimension_numbers = #tpu.dot_dimension_numbers<[1], [0], [0], [1], [0, 0, 1, 1], [], []>} : vector<64x6xbf16>, vector<6x6xbf16>, vector<64x6xf32> -> vector<64x6xf32>
    %185 = arith.addf %172, %184 : vector<64x6xf32>
    %186 = vector.extract_strided_slice %115 {offsets = [7, 0], sizes = [57, 6], strides = [1, 1]} : vector<64x6xf32> to vector<57x6xf32>
    %187 = vector.extract_strided_slice %115 {offsets = [0, 0], sizes = [7, 6], strides = [1, 1]} : vector<64x6xf32> to vector<7x6xf32>
    %188 = tpu.concatenate %186, %187 in 0 : vector<57x6xf32>, vector<7x6xf32> -> vector<64x6xf32>
    %c6_95 = arith.constant 6 : index
    %c0_96 = arith.constant 0 : index
    %c0_97 = arith.constant 0 : index
    %189 = vector.load %arg2[%c6_95, %c0_96, %c0_97] : memref<9x64x1xf32, #tpu.memory_space<vmem>>, vector<1x64x1xf32>
    %190 = vector.shape_cast %189 : vector<1x64x1xf32> to vector<64x1xf32>
    %191 = vector.broadcast %190 : vector<64x1xf32> to vector<64x6xf32>
    %192 = arith.mulf %188, %191 : vector<64x6xf32>
    %193 = arith.truncf %192 : vector<64x6xf32> to vector<64x6xbf16>
    %c6_98 = arith.constant 6 : index
    %c0_99 = arith.constant 0 : index
    %c0_100 = arith.constant 0 : index
    %194 = vector.load %arg5[%c6_98, %c0_99, %c0_100] : memref<9x6x6xf32, #tpu.memory_space<vmem>>, vector<1x6x6xf32>
    %195 = vector.shape_cast %194 : vector<1x6x6xf32> to vector<6x6xf32>
    %196 = arith.truncf %195 : vector<6x6xf32> to vector<6x6xbf16>
    %cst_101 = arith.constant dense<0.000000e+00> : vector<64x6xf32>
    %197 = tpu.matmul %193, %196, %cst_101 {dimension_numbers = #tpu.dot_dimension_numbers<[1], [0], [0], [1], [0, 0, 1, 1], [], []>} : vector<64x6xbf16>, vector<6x6xbf16>, vector<64x6xf32> -> vector<64x6xf32>
    %198 = arith.addf %185, %197 : vector<64x6xf32>
    %199 = vector.extract_strided_slice %115 {offsets = [8, 0], sizes = [56, 6], strides = [1, 1]} : vector<64x6xf32> to vector<56x6xf32>
    %200 = vector.extract_strided_slice %115 {offsets = [0, 0], sizes = [8, 6], strides = [1, 1]} : vector<64x6xf32> to vector<8x6xf32>
    %201 = tpu.concatenate %199, %200 in 0 : vector<56x6xf32>, vector<8x6xf32> -> vector<64x6xf32>
    %c7_102 = arith.constant 7 : index
    %c0_103 = arith.constant 0 : index
    %c0_104 = arith.constant 0 : index
    %202 = vector.load %arg2[%c7_102, %c0_103, %c0_104] : memref<9x64x1xf32, #tpu.memory_space<vmem>>, vector<1x64x1xf32>
    %203 = vector.shape_cast %202 : vector<1x64x1xf32> to vector<64x1xf32>
    %204 = vector.broadcast %203 : vector<64x1xf32> to vector<64x6xf32>
    %205 = arith.mulf %201, %204 : vector<64x6xf32>
    %206 = arith.truncf %205 : vector<64x6xf32> to vector<64x6xbf16>
    %c7_105 = arith.constant 7 : index
    %c0_106 = arith.constant 0 : index
    %c0_107 = arith.constant 0 : index
    %207 = vector.load %arg5[%c7_105, %c0_106, %c0_107] : memref<9x6x6xf32, #tpu.memory_space<vmem>>, vector<1x6x6xf32>
    %208 = vector.shape_cast %207 : vector<1x6x6xf32> to vector<6x6xf32>
    %209 = arith.truncf %208 : vector<6x6xf32> to vector<6x6xbf16>
    %cst_108 = arith.constant dense<0.000000e+00> : vector<64x6xf32>
    %210 = tpu.matmul %206, %209, %cst_108 {dimension_numbers = #tpu.dot_dimension_numbers<[1], [0], [0], [1], [0, 0, 1, 1], [], []>} : vector<64x6xbf16>, vector<6x6xbf16>, vector<64x6xf32> -> vector<64x6xf32>
    %211 = arith.addf %198, %210 : vector<64x6xf32>
    %212 = vector.extract_strided_slice %115 {offsets = [9, 0], sizes = [55, 6], strides = [1, 1]} : vector<64x6xf32> to vector<55x6xf32>
    %213 = vector.extract_strided_slice %115 {offsets = [0, 0], sizes = [9, 6], strides = [1, 1]} : vector<64x6xf32> to vector<9x6xf32>
    %214 = tpu.concatenate %212, %213 in 0 : vector<55x6xf32>, vector<9x6xf32> -> vector<64x6xf32>
    %c8_109 = arith.constant 8 : index
    %c0_110 = arith.constant 0 : index
    %c0_111 = arith.constant 0 : index
    %215 = vector.load %arg2[%c8_109, %c0_110, %c0_111] : memref<9x64x1xf32, #tpu.memory_space<vmem>>, vector<1x64x1xf32>
    %216 = vector.shape_cast %215 : vector<1x64x1xf32> to vector<64x1xf32>
    %217 = vector.broadcast %216 : vector<64x1xf32> to vector<64x6xf32>
    %218 = arith.mulf %214, %217 : vector<64x6xf32>
    %219 = arith.truncf %218 : vector<64x6xf32> to vector<64x6xbf16>
    %c8_112 = arith.constant 8 : index
    %c0_113 = arith.constant 0 : index
    %c0_114 = arith.constant 0 : index
    %220 = vector.load %arg5[%c8_112, %c0_113, %c0_114] : memref<9x6x6xf32, #tpu.memory_space<vmem>>, vector<1x6x6xf32>
    %221 = vector.shape_cast %220 : vector<1x6x6xf32> to vector<6x6xf32>
    %222 = arith.truncf %221 : vector<6x6xf32> to vector<6x6xbf16>
    %cst_115 = arith.constant dense<0.000000e+00> : vector<64x6xf32>
    %223 = tpu.matmul %219, %222, %cst_115 {dimension_numbers = #tpu.dot_dimension_numbers<[1], [0], [0], [1], [0, 0, 1, 1], [], []>} : vector<64x6xbf16>, vector<6x6xbf16>, vector<64x6xf32> -> vector<64x6xf32>
    %224 = arith.addf %211, %223 : vector<64x6xf32>
    %c0_116 = arith.constant 0 : index
    %c0_117 = arith.constant 0 : index
    %225 = vector.load %arg6[%c0_116, %c0_117] : memref<1x6xf32, #tpu.memory_space<vmem>>, vector<1x6xf32>
    %226 = vector.broadcast %225 : vector<1x6xf32> to vector<64x6xf32>
    %227 = arith.addf %224, %226 : vector<64x6xf32>
    %cst_118 = arith.constant 0.000000e+00 : f32
    %228 = vector.broadcast %cst_118 : f32 to vector<64x6xf32>
    %229 = arith.maximumf %227, %228 : vector<64x6xf32>
    %cst_119 = arith.constant dense<0.000000e+00> : vector<6xf32>
    %230 = vector.multi_reduction <add>, %229, %cst_119 [0] : vector<64x6xf32> to vector<6xf32>
    %231 = vector.shape_cast %230 : vector<6xf32> to vector<1x6xf32>
    %c0_120 = arith.constant 0 : index
    %c0_121 = arith.constant 0 : index
    %c0_122 = arith.constant 0 : index
    %232 = vector.load %arg7[%c0_120, %c0_121, %c0_122] : memref<1x1x6xf32, #tpu.memory_space<vmem>>, vector<1x1x6xf32>
    %233 = vector.shape_cast %232 : vector<1x1x6xf32> to vector<1x6xf32>
    %234 = vector.shape_cast %231 : vector<1x6xf32> to vector<1x1x6xf32>
    tpu.vector_store %arg7[%c0_120, %c0_121, %c0_122], %234 {strides = array<i32>} : memref<1x1x6xf32, #tpu.memory_space<vmem>>, vector<1x1x6xf32>,
    return
  }
  func.func @transform_0(%arg0: i32) -> (i32, i32, i32) {
    %c0_i32 = arith.constant 0 : i32
    %c0_i32_0 = arith.constant 0 : i32
    %c0_i32_1 = arith.constant 0 : i32
    return %arg0, %c0_i32, %c0_i32_0 : i32, i32, i32
  }
  func.func @transform_1(%arg0: i32) -> (i32, i32, i32) {
    %c0_i32 = arith.constant 0 : i32
    %c0_i32_0 = arith.constant 0 : i32
    %c0_i32_1 = arith.constant 0 : i32
    %c0_i32_2 = arith.constant 0 : i32
    return %c0_i32, %c0_i32_0, %c0_i32_1 : i32, i32, i32
  }
  func.func @transform_2(%arg0: i32) -> (i32, i32, i32) {
    %c0_i32 = arith.constant 0 : i32
    %c0_i32_0 = arith.constant 0 : i32
    %c0_i32_1 = arith.constant 0 : i32
    %c0_i32_2 = arith.constant 0 : i32
    return %c0_i32, %c0_i32_0, %c0_i32_1 : i32, i32, i32
  }
  func.func @transform_3(%arg0: i32) -> (i32, i32) {
    %c0_i32 = arith.constant 0 : i32
    %c0_i32_0 = arith.constant 0 : i32
    %c0_i32_1 = arith.constant 0 : i32
    return %c0_i32, %c0_i32_0 : i32, i32
  }
  func.func @transform_4(%arg0: i32) -> (i32, i32, i32) {
    %c0_i32 = arith.constant 0 : i32
    %c0_i32_0 = arith.constant 0 : i32
    %c0_i32_1 = arith.constant 0 : i32
    %c0_i32_2 = arith.constant 0 : i32
    return %c0_i32, %c0_i32_0, %c0_i32_1 : i32, i32, i32
  }
  func.func @transform_5(%arg0: i32) -> (i32, i32) {
    %c0_i32 = arith.constant 0 : i32
    %c0_i32_0 = arith.constant 0 : i32
    %c0_i32_1 = arith.constant 0 : i32
    return %c0_i32, %c0_i32_0 : i32, i32
  }
  func.func @transform_6(%arg0: i32) -> (i32, i32, i32) {
    %c0_i32 = arith.constant 0 : i32
    %c0_i32_0 = arith.constant 0 : i32
    %c0_i32_1 = arith.constant 0 : i32
    return %arg0, %c0_i32, %c0_i32_0 : i32, i32, i32
  }
}

</mosaic_0001>

<llo_original>
// kernel: tpu_custom_call.1
$region0: #{tpu_custom_call.1}
  #allocation0 [shape = 'u32[]', space=smem, size = 0x4, offset = 0x4, fixed_abs, tag = 'smem constant byte address 0x4 - core index']
  #allocation1 [shape = 'u32[144,128]{1,0:T(1,128)}', space=vmem, size = 0x12000, scoped, tag = 'internal scratch']
  %s0 = inlined_call_operand.vmem [shape: f32[2,64,3], index: 0, kind: input, shape index: {}]
  %s1 = inlined_call_operand.vmem [shape: f32[9,64,1], index: 1, kind: input, shape index: {}]
  %s2 = inlined_call_operand.vmem [shape: f32[9,3,6], index: 2, kind: input, shape index: {}]
  %s3 = inlined_call_operand.vmem [shape: f32[1,6], index: 3, kind: input, shape index: {}]
  %s4 = inlined_call_operand.vmem [shape: f32[9,6,6], index: 4, kind: input, shape index: {}]
  %s5 = inlined_call_operand.vmem [shape: f32[1,6], index: 5, kind: input, shape index: {}]
  %s6 = inlined_call_operand.hbm [shape: f32[2,1,6], index: 6, kind: output, shape index: {}]
  %s7 = sld [smem:[#allocation0]]
  $region57: #{tpu_custom_call.1} parent=0
    _
  %s9 = ssub.s32 1, %s7
  %s10 = scalar_select 0, %s9, %s7
  $region1: #{tpu_custom_call.1} parent=0
    #allocation2 [shape = 'u8[1024]{0}', space=vmem, size = 0x400, scoped, tag = 'output window, operand 0']
    #allocation3 [shape = 's32[2]{0}', space=sflag, size = 0x8, scoped, tag = 'scoped memory for tpu_custom_call.1']
    %11 = vsyncpa [#allocation3], 0
    %s12 = scalar_lea.sflag [#allocation3], 1
    %13 = vsyncpa %s12, 0
    loop: start=0, step=1, limit=4
    $region2: #{tpu_custom_call.1} parent=1 // loop_pre_header
      _
    $region3: #{tpu_custom_call.1} parent=1 // loop_header
      %s15 = sphi 0, %s19
      %p16 = scmp.ge.s32.totalorder %s15, 4
      %s25 = sphi 0, %s27
      %s28 = sphi 0, %s25
      %s29 = sphi 0, %s28
      %s45 = sphi 0, %s29
      %s49 = sphi 0, %s49
      %s51 = sphi 0, %s49
      %s52 = sphi 0, %s51
      %s66 = sphi 0, %s52
      %s70 = sphi 0, %s70
      %s72 = sphi 0, %s70
      %s73 = sphi 0, %s72
      %s87 = sphi 0, %s73
      %s91 = sphi 0, %s91
      %s93 = sphi 0, %s91
      %s94 = sphi 0, %s93
      %s108 = sphi 0, %s94
      %s112 = sphi 0, %s112
      %s114 = sphi 0, %s112
      %s115 = sphi 0, %s114
      %s129 = sphi 0, %s115
      %s133 = sphi 0, %s133
      %s135 = sphi 0, %s133
      %s136 = sphi 0, %s135
      %s150 = sphi 0, %s136
      %s156 = sphi 0, %s158
      %s159 = sphi 0, %s156
      %s160 = sphi 0, %s159
      %s176 = sphi 0, %s160
    $region4: #{tpu_custom_call.1} parent=1 // loop_header_branch
      %18 = sbr.rel (%p16) target = $region8
    $region5: #{tpu_custom_call.1} parent=1 // loop_body
      %s20 = ssub.s32 %s15, 1
      %s21 = ssub.s32 %s15, 2
      %s22 = sadd.s32 %s15, 1
      %s23 = ssub.s32 %s15, %s22
      %p24 = scmp.eq.s32.totalorder %s23, 0
      %s26 = sadd.s32 %s25, 1
      %s27 = scalar_select %p24, %s25, %s26
      %p30 = pneg %p24
      %p31 = scmp.eq.s32.totalorder %s15, 1
      %p32 = por %p30, %p31
      %p33 = scmp.ne.s32.totalorder %s25, %s28
      %p34 = scmp.eq.s32.totalorder %s15, 0
      %p35 = por %p33, %p34
      %p36 = scmp.ne.s32.totalorder %s25, %s28
      %p37 = scmp.eq.s32.totalorder %s20, 1
      %p38 = por %p36, %p37
      %p39 = scmp.ne.s32.totalorder %s28, %s29
      %p40 = scmp.eq.s32.totalorder %s20, 0
      %p41 = por %p39, %p40
      %p42 = scmp.ne.s32.totalorder %s28, %s29
      %p43 = scmp.eq.s32.totalorder %s21, 1
      %p44 = por %p42, %p43
      %p46 = scmp.ne.s32.totalorder %s29, %s45
      %p47 = scmp.eq.s32.totalorder %s21, 0
      %p48 = por %p46, %p47
      %s50 = sadd.s32 %s49, 1
      %p53 = scmp.eq.s32.totalorder %s15, 1
      %p54 = scmp.ne.s32.totalorder %s49, %s51
      %p55 = scmp.eq.s32.totalorder %s15, 0
      %p56 = por %p54, %p55
      %p57 = scmp.ne.s32.totalorder %s49, %s51
      %p58 = scmp.eq.s32.totalorder %s20, 1
      %p59 = por %p57, %p58
      %p60 = scmp.ne.s32.totalorder %s51, %s52
      %p61 = scmp.eq.s32.totalorder %s20, 0
      %p62 = por %p60, %p61
      %p63 = scmp.ne.s32.totalorder %s51, %s52
      %p64 = scmp.eq.s32.totalorder %s21, 1
      %p65 = por %p63, %p64
      %p67 = scmp.ne.s32.totalorder %s52, %s66
      %p68 = scmp.eq.s32.totalorder %s21, 0
      %p69 = por %p67, %p68
      %s71 = sadd.s32 %s70, 1
      %p74 = scmp.eq.s32.totalorder %s15, 1
      %p75 = scmp.ne.s32.totalorder %s70, %s72
      %p76 = scmp.eq.s32.totalorder %s15, 0
      %p77 = por %p75, %p76
      %p78 = scmp.ne.s32.totalorder %s70, %s72
      %p79 = scmp.eq.s32.totalorder %s20, 1
      %p80 = por %p78, %p79
      %p81 = scmp.ne.s32.totalorder %s72, %s73
      %p82 = scmp.eq.s32.totalorder %s20, 0
      %p83 = por %p81, %p82
      %p84 = scmp.ne.s32.totalorder %s72, %s73
      %p85 = scmp.eq.s32.totalorder %s21, 1
      %p86 = por %p84, %p85
      %p88 = scmp.ne.s32.totalorder %s73, %s87
      %p89 = scmp.eq.s32.totalorder %s21, 0
      %p90 = por %p88, %p89
      %s92 = sadd.s32 %s91, 1
      %p95 = scmp.eq.s32.totalorder %s15, 1
      %p96 = scmp.ne.s32.totalorder %s91, %s93
      %p97 = scmp.eq.s32.totalorder %s15, 0
      %p98 = por %p96, %p97
      %p99 = scmp.ne.s32.totalorder %s91, %s93
      %p100 = scmp.eq.s32.totalorder %s20, 1
      %p101 = por %p99, %p100
      %p102 = scmp.ne.s32.totalorder %s93, %s94
      %p103 = scmp.eq.s32.totalorder %s20, 0
      %p104 = por %p102, %p103
      %p105 = scmp.ne.s32.totalorder %s93, %s94
      %p106 = scmp.eq.s32.totalorder %s21, 1
      %p107 = por %p105, %p106
      %p109 = scmp.ne.s32.totalorder %s94, %s108
      %p110 = scmp.eq.s32.totalorder %s21, 0
      %p111 = por %p109, %p110
      %s113 = sadd.s32 %s112, 1
      %p116 = scmp.eq.s32.totalorder %s15, 1
      %p117 = scmp.ne.s32.totalorder %s112, %s114
      %p118 = scmp.eq.s32.totalorder %s15, 0
      %p119 = por %p117, %p118
      %p120 = scmp.ne.s32.totalorder %s112, %s114
      %p121 = scmp.eq.s32.totalorder %s20, 1
      %p122 = por %p120, %p121
      %p123 = scmp.ne.s32.totalorder %s114, %s115
      %p124 = scmp.eq.s32.totalorder %s20, 0
      %p125 = por %p123, %p124
      %p126 = scmp.ne.s32.totalorder %s114, %s115
      %p127 = scmp.eq.s32.totalorder %s21, 1
      %p128 = por %p126, %p127
      %p130 = scmp.ne.s32.totalorder %s115, %s129
      %p131 = scmp.eq.s32.totalorder %s21, 0
      %p132 = por %p130, %p131
      %s134 = sadd.s32 %s133, 1
      %p137 = scmp.eq.s32.totalorder %s15, 1
      %p138 = scmp.ne.s32.totalorder %s133, %s135
      %p139 = scmp.eq.s32.totalorder %s15, 0
      %p140 = por %p138, %p139
      %p141 = scmp.ne.s32.totalorder %s133, %s135
      %p142 = scmp.eq.s32.totalorder %s20, 1
      %p143 = por %p141, %p142
      %p144 = scmp.ne.s32.totalorder %s135, %s136
      %p145 = scmp.eq.s32.totalorder %s20, 0
      %p146 = por %p144, %p145
      %p147 = scmp.ne.s32.totalorder %s135, %s136
      %p148 = scmp.eq.s32.totalorder %s21, 1
      %p149 = por %p147, %p148
      %p151 = scmp.ne.s32.totalorder %s136, %s150
      %p152 = scmp.eq.s32.totalorder %s21, 0
      %p153 = por %p151, %p152
      %s154 = ssub.s32 %s15, %s22
      %p155 = scmp.eq.s32.totalorder %s154, 0
      %s157 = sadd.s32 %s156, 1
      %s158 = scalar_select %p155, %s156, %s157
      %p161 = pneg %p155
      %p162 = scmp.eq.s32.totalorder %s15, 1
      %p163 = por %p161, %p162
      %p164 = scmp.ne.s32.totalorder %s156, %s159
      %p165 = scmp.eq.s32.totalorder %s15, 0
      %p166 = por %p164, %p165
      %p167 = scmp.ne.s32.totalorder %s156, %s159
      %p168 = scmp.eq.s32.totalorder %s20, 1
      %p169 = por %p167, %p168
      %p170 = scmp.ne.s32.totalorder %s159, %s160
      %p171 = scmp.eq.s32.totalorder %s20, 0
      %p172 = por %p170, %p171
      %p173 = scmp.ne.s32.totalorder %s159, %s160
      %p174 = scmp.eq.s32.totalorder %s21, 1
      %p175 = por %p173, %p174
      %p177 = scmp.ne.s32.totalorder %s160, %s176
      %p178 = scmp.eq.s32.totalorder %s21, 0
      %p179 = por %p177, %p178
      %p180 = scmp.le.s32.totalorder 1, %s15
      %p181 = scmp.lt.s32.totalorder %s15, 3
      %p182 = pnand %p180, %p181
      %p183 = pneg %p182
      // Predicated region
      $region9: #{tpu_custom_call.1} parent=5 // pred_check
        _
      $region10: #{tpu_custom_call.1} parent=5 // pred_check_branch
        %185 = sbr.rel (%p182) target = $region12
      $region11: #{tpu_custom_call.1} parent=5 // pred_region
        %s186 = ssub.s32 %s15, 1
        // Predicated region
        $region13: #{tpu_custom_call.1} parent=11 // pred_check
          %p187 = pneg %p62
        $region14: #{tpu_custom_call.1} parent=11 // pred_check_branch
          %189 = sbr.rel (%p187) target = $region16
        $region15: #{tpu_custom_call.1} parent=11 // pred_region
          _
        $region16: #{tpu_custom_call.1} parent=11 // pred_fallthru
          _
        // Predicated region
        $region17: #{tpu_custom_call.1} parent=11 // pred_check
          %p190 = pneg %p83
        $region18: #{tpu_custom_call.1} parent=11 // pred_check_branch
          %192 = sbr.rel (%p190) target = $region20
        $region19: #{tpu_custom_call.1} parent=11 // pred_region
          _
        $region20: #{tpu_custom_call.1} parent=11 // pred_fallthru
          _
        // Predicated region
        $region21: #{tpu_custom_call.1} parent=11 // pred_check
          %p193 = pneg %p104
        $region22: #{tpu_custom_call.1} parent=11 // pred_check_branch
          %195 = sbr.rel (%p193) target = $region24
        $region23: #{tpu_custom_call.1} parent=11 // pred_region
          _
        $region24: #{tpu_custom_call.1} parent=11 // pred_fallthru
          _
        // Predicated region
        $region25: #{tpu_custom_call.1} parent=11 // pred_check
          %p196 = pneg %p125
        $region26: #{tpu_custom_call.1} parent=11 // pred_check_branch
          %198 = sbr.rel (%p196) target = $region28
        $region27: #{tpu_custom_call.1} parent=11 // pred_region
          _
        $region28: #{tpu_custom_call.1} parent=11 // pred_fallthru
          _
        // Predicated region
        $region29: #{tpu_custom_call.1} parent=11 // pred_check
          %p199 = pneg %p146
        $region30: #{tpu_custom_call.1} parent=11 // pred_check_branch
          %201 = sbr.rel (%p199) target = $region32
        $region31: #{tpu_custom_call.1} parent=11 // pred_region
          _
        $region32: #{tpu_custom_call.1} parent=11 // pred_fallthru
          _
      $region12: #{tpu_custom_call.1} parent=5 // pred_fallthru
        _
      %p202 = scmp.lt.s32.totalorder %s15, 2
      // Predicated region
      $region33: #{tpu_custom_call.1} parent=5 // pred_check
        %p203 = pneg %p202
      $region34: #{tpu_custom_call.1} parent=5 // pred_check_branch
        %205 = sbr.rel (%p203) target = $region36
      $region35: #{tpu_custom_call.1} parent=5 // pred_region
        // Predicated region
        $region37: #{tpu_custom_call.1} parent=35 // pred_check
          %p206 = pneg %p35
        $region38: #{tpu_custom_call.1} parent=35 // pred_check_branch
          %208 = sbr.rel (%p206) target = $region40
        $region39: #{tpu_custom_call.1} parent=35 // pred_region
          %p209 = scmp.lt.s32.totalorder %s15, 1
          %s210 = scalar_select %p209, %s15, 1
          %s211 = smul.addr %s210, 8
          %s212 = smul.addr %s211, 8
          %s213 = scalar_lea.vmem %s0, %s212
        $region40: #{tpu_custom_call.1} parent=35 // pred_fallthru
          _
      $region36: #{tpu_custom_call.1} parent=5 // pred_fallthru
        _
      %p214 = scmp.le.s32.totalorder 1, %s15
      %p215 = scmp.lt.s32.totalorder %s15, 3
      %p216 = pnand %p214, %p215
      %p217 = pneg %p216
      // Predicated region
      $region41: #{tpu_custom_call.1} parent=5 // pred_check
        _
      $region42: #{tpu_custom_call.1} parent=5 // pred_check_branch
        %219 = sbr.rel (%p216) target = $region44
      $region43: #{tpu_custom_call.1} parent=5 // pred_region
        %s220 = ssub.s32 %s15, 1
        %p221 = scmp.lt.s32.totalorder %s20, 1
        %s222 = scalar_select %p221, %s20, 1
        %s223 = smul.addr %s222, 8
        %s224 = smul.addr %s223, 8
        %s225 = scalar_lea.vmem %s0, %s224
        %p226 = pneg %p41
        %p227 = pneg %p38
        %p228 = pneg %p62
        %p229 = pneg %p59
        %p230 = pneg %p83
        %p231 = pneg %p80
        %p232 = pneg %p104
        %p233 = pneg %p101
        %p234 = pneg %p125
        %p235 = pneg %p122
        %p236 = pneg %p146
        %p237 = pneg %p143
        %p238 = pneg %p172
        %p239 = pneg %p169
        %s240 = sand.u32 %s159, 1
        %s241 = scalar_lea.sflag [#allocation3], %s240
        %s242 = sand.u32 %s159, 1
        %s243 = scalar_lea.vmem [#allocation2], %s242
        %p244 = scmp.lt.s32.totalorder %s20, 1
        %s245 = scalar_select %p244, %s20, 1
        %s246 = smul.addr %s245, 8
        %s247 = smul.addr %s246, 8
        %s248 = scalar_lea.vmem %s0, %s247
        %v250 = vld [vmem:[%s248] sm:$0xff]
        %v251 = vld [vmem:[%s248 + $0x8] sm:$0xff]
        %v252 = vld [vmem:[%s248 + $0x10] sm:$0xff]
        %v253 = vld [vmem:[%s248 + $0x18] sm:$0xff]
        %v254 = vld [vmem:[%s248 + $0x20] sm:$0xff]
        %v255 = vld [vmem:[%s248 + $0x28] sm:$0xff]
        %v256 = vld [vmem:[%s248 + $0x30] sm:$0xff]
        %v257 = vld [vmem:[%s248 + $0x38] sm:$0xff]
        %vm260 = vcmask 1040384
        %v261 = vrot.slane %v256, 7
        %v262 = vrot.slane %v257, 7
        %v263 = vsel %vm260, %v261, %v262
        %v272 = vrot.slane %v250, 7
        %v273 = vrot.slane %v251, 7
        %v274 = vsel %vm260, %v272, %v273
        %v275 = vrot.slane %v252, 7
        %v276 = vsel %vm260, %v273, %v275
        %v277 = vrot.slane %v253, 7
        %v278 = vsel %vm260, %v275, %v277
        %v279 = vrot.slane %v254, 7
        %v280 = vsel %vm260, %v277, %v279
        %v281 = vrot.slane %v255, 7
        %v282 = vsel %vm260, %v279, %v281
        %v283 = vsel %vm260, %v281, %v261
        %v291 = vsel %vm260, %v262, %v272
        %v292 = vld [vmem:[%s1] sm:$0xff]
        %v293 = vld [vmem:[%s1 + $0x8] sm:$0xff]
        %v294 = vld [vmem:[%s1 + $0x10] sm:$0xff]
        %v295 = vld [vmem:[%s1 + $0x18] sm:$0xff]
        %v296 = vld [vmem:[%s1 + $0x20] sm:$0xff]
        %v297 = vld [vmem:[%s1 + $0x28] sm:$0xff]
        %v298 = vld [vmem:[%s1 + $0x30] sm:$0xff]
        %v299 = vld [vmem:[%s1 + $0x38] sm:$0xff]
        %301 = vset.pattern.permute.xlu0 0
        %302 = vperm.xlu0 %301, %v292
        %v303 = vpop.permute.xlu0 %302
        %306 = vset.pattern.permute.xlu0 0
        %307 = vperm.xlu0 %306, %v293
        %v308 = vpop.permute.xlu0 %307
        %311 = vset.pattern.permute.xlu0 0
        %312 = vperm.xlu0 %311, %v294
        %v313 = vpop.permute.xlu0 %312
        %316 = vset.pattern.permute.xlu0 0
        %317 = vperm.xlu0 %316, %v295
        %v318 = vpop.permute.xlu0 %317
        %321 = vset.pattern.permute.xlu0 0
        %322 = vperm.xlu0 %321, %v296
        %v323 = vpop.permute.xlu0 %322
        %326 = vset.pattern.permute.xlu0 0
        %327 = vperm.xlu0 %326, %v297
        %v328 = vpop.permute.xlu0 %327
        %331 = vset.pattern.permute.xlu0 0
        %332 = vperm.xlu0 %331, %v298
        %v333 = vpop.permute.xlu0 %332
        %336 = vset.pattern.permute.xlu0 0
        %337 = vperm.xlu0 %336, %v299
        %v338 = vpop.permute.xlu0 %337
        %v340 = vmul.f32 %v263, %v303
        %v341 = vmul.f32 %v291, %v308
        %v342 = vmul.f32 %v274, %v313
        %v343 = vmul.f32 %v276, %v318
        %v344 = vmul.f32 %v278, %v323
        %v345 = vmul.f32 %v280, %v328
        %v346 = vmul.f32 %v282, %v333
        %v347 = vmul.f32 %v283, %v338
        %v348 = vpack.c.bf16 %v341, %v340
        %v349 = vpack.c.bf16 %v343, %v342
        %v350 = vpack.c.bf16 %v345, %v344
        %v351 = vpack.c.bf16 %v347, %v346
        %v352 = vld [vmem:[%s2] sm:$0x7]
        %v353 = vpack.c.bf16 %v352, %v352
        %s354 = scalar_lea.vmem %s1, 64
        %v355 = vld [vmem:[%s354] sm:$0xff]
        %v356 = vld [vmem:[%s354 + $0x8] sm:$0xff]
        %v357 = vld [vmem:[%s354 + $0x10] sm:$0xff]
        %v358 = vld [vmem:[%s354 + $0x18] sm:$0xff]
        %v359 = vld [vmem:[%s354 + $0x20] sm:$0xff]
        %v360 = vld [vmem:[%s354 + $0x28] sm:$0xff]
        %v361 = vld [vmem:[%s354 + $0x30] sm:$0xff]
        %v362 = vld [vmem:[%s354 + $0x38] sm:$0xff]
        %364 = vset.pattern.permute.xlu0 0
        %365 = vperm.xlu0 %364, %v355
        %v366 = vpop.permute.xlu0 %365
        %369 = vset.pattern.permute.xlu0 0
        %370 = vperm.xlu0 %369, %v356
        %v371 = vpop.permute.xlu0 %370
        %374 = vset.pattern.permute.xlu0 0
        %375 = vperm.xlu0 %374, %v357
        %v376 = vpop.permute.xlu0 %375
        %379 = vset.pattern.permute.xlu0 0
        %380 = vperm.xlu0 %379, %v358
        %v381 = vpop.permute.xlu0 %380
        %384 = vset.pattern.permute.xlu0 0
        %385 = vperm.xlu0 %384, %v359
        %v386 = vpop.permute.xlu0 %385
        %389 = vset.pattern.permute.xlu0 0
        %390 = vperm.xlu0 %389, %v360
        %v391 = vpop.permute.xlu0 %390
        %394 = vset.pattern.permute.xlu0 0
        %395 = vperm.xlu0 %394, %v361
        %v396 = vpop.permute.xlu0 %395
        %399 = vset.pattern.permute.xlu0 0
        %400 = vperm.xlu0 %399, %v362
        %v401 = vpop.permute.xlu0 %400
        %v403 = vmul.f32 %v257, %v366
        %v404 = vmul.f32 %v250, %v371
        %v405 = vmul.f32 %v251, %v376
        %v406 = vmul.f32 %v252, %v381
        %v407 = vmul.f32 %v253, %v386
        %v408 = vmul.f32 %v254, %v391
        %v409 = vmul.f32 %v255, %v396
        %v410 = vmul.f32 %v256, %v401
        %v411 = vpack.c.bf16 %v404, %v403
        %v412 = vpack.c.bf16 %v406, %v405
        %v413 = vpack.c.bf16 %v408, %v407
        %v414 = vpack.c.bf16 %v410, %v409
        %s415 = scalar_lea.vmem %s2, 4
        %v416 = vld [vmem:[%s415] sm:$0x7]
        %v417 = vpack.c.bf16 %v416, %v416
        %vm418 = vcmask 23552
        %v420 = vsel %vm418, %v411, 0
        %v423 = vsel %vm418, %v412, 0
        %v426 = vsel %vm418, %v413, 0
        %v429 = vsel %vm418, %v414, 0
        %vm431 = vcmask 1041408
        %v432 = vsel %vm260, 4294967295, 65535
        %v433 = vsel %vm431, %v432, 0
        %v435 = vand.u32 %v417, %v433
        %437 = vmatprep.subr.bf16.mxu0 0
        %438 = vmatpush1.bf16.msra.mxu0 0
        %439 = vmatprep.subr.bf16.mxu0 0
        %440 = vmatpush1.bf16.msra.mxu0 0
        %441 = vmatprep.subr.bf16.mxu0 0
        %442 = vmatpush1.bf16.msra.mxu0 0
        %443 = vmatprep.subr.bf16.mxu0 0
        %444 = vmatpush1.bf16.msra.mxu0 0
        %445 = vmatprep.subr.bf16.mxu0 0
        %446 = vmatpush1.bf16.msra.mxu0 0
        %447 = vmatprep.subr.bf16.mxu0 0
        %448 = vmatpush1.bf16.msra.mxu0 0
        %449 = vmatprep.subr.bf16.mxu0 0
        %450 = vmatpush1.bf16.msra.mxu0 0
        %451 = vmatprep.subr.bf16.mxu0 0
        %452 = vmatpush1.bf16.msra.mxu0 %v435
        %453 = vmatprep.subr.bf16.mxu0 0
        %454 = vmatpush2.bf16.msra.mxu0 0
        %455 = vmatprep.subr.bf16.mxu0 0
        %456 = vmatpush2.bf16.msra.mxu0 0
        %457 = vmatprep.subr.bf16.mxu0 0
        %458 = vmatpush2.bf16.msra.mxu0 0
        %459 = vmatprep.subr.bf16.mxu0 0
        %460 = vmatpush2.bf16.msra.mxu0 0
        %461 = vmatprep.subr.bf16.mxu0 0
        %462 = vmatpush2.bf16.msra.mxu0 0
        %463 = vmatprep.subr.bf16.mxu0 0
        %464 = vmatpush2.bf16.msra.mxu0 0
        %465 = vmatprep.subr.bf16.mxu0 0
        %466 = vmatpush2.bf16.msra.mxu0 0
        %467 = vmatprep.subr.bf16.mxu0 0
        %468 = vmatpush2.bf16.msra.mxu0 0
        %469 = vmatprep.mubr.bf16.mxu0 0
        %470 = vmatmul.mubr.bf16.gmra.mxu0 %v420
        %v471 = vpop.f32.mrf.mxu0
        %v472 = vadd.f32 0.0, %v471
        %v473 = vpop.f32.mrf.mxu0
        %v474 = vpop.f32.mrf.mxu0
        %v475 = vadd.f32 0.0, %v474
        %v476 = vpop.f32.mrf.mxu0
        %477 = vmatprep.mubr.bf16.mxu0 0
        %478 = vmatmul.mubr.bf16.gmra.mxu0 %v423
        %v479 = vpop.f32.mrf.mxu0
        %v480 = vadd.f32 0.0, %v479
        %v481 = vpop.f32.mrf.mxu0
        %v482 = vpop.f32.mrf.mxu0
        %v483 = vadd.f32 0.0, %v482
        %v484 = vpop.f32.mrf.mxu0
        %485 = vmatprep.mubr.bf16.mxu0 0
        %486 = vmatmul.mubr.bf16.gmra.mxu0 %v426
        %v487 = vpop.f32.mrf.mxu0
        %v488 = vadd.f32 0.0, %v487
        %v489 = vpop.f32.mrf.mxu0
        %v490 = vpop.f32.mrf.mxu0
        %v491 = vadd.f32 0.0, %v490
        %v492 = vpop.f32.mrf.mxu0
        %493 = vmatprep.mubr.bf16.mxu0 0
        %494 = vmatmul.mubr.bf16.gmra.mxu0 %v429
        %v495 = vpop.f32.mrf.mxu0
        %v496 = vadd.f32 0.0, %v495
        %v497 = vpop.f32.mrf.mxu0
        %v498 = vpop.f32.mrf.mxu0
        %v499 = vadd.f32 0.0, %v498
        %v500 = vpop.f32.mrf.mxu0
        %501 = vdwg.mxu0
        %v503 = vsel %vm418, %v348, 0
        %v506 = vsel %vm418, %v349, 0
        %v509 = vsel %vm418, %v350, 0
        %v512 = vsel %vm418, %v351, 0
        %v515 = vand.u32 %v353, %v433
        %517 = vmatprep.subr.bf16.mxu0 0
        %518 = vmatpush1.bf16.msra.mxu0 0
        %519 = vmatprep.subr.bf16.mxu0 0
        %520 = vmatpush1.bf16.msra.mxu0 0
        %521 = vmatprep.subr.bf16.mxu0 0
        %522 = vmatpush1.bf16.msra.mxu0 0
        %523 = vmatprep.subr.bf16.mxu0 0
        %524 = vmatpush1.bf16.msra.mxu0 0
        %525 = vmatprep.subr.bf16.mxu0 0
        %526 = vmatpush1.bf16.msra.mxu0 0
        %527 = vmatprep.subr.bf16.mxu0 0
        %528 = vmatpush1.bf16.msra.mxu0 0
        %529 = vmatprep.subr.bf16.mxu0 0
        %530 = vmatpush1.bf16.msra.mxu0 0
        %531 = vmatprep.subr.bf16.mxu0 0
        %532 = vmatpush1.bf16.msra.mxu0 %v515
        %533 = vmatprep.subr.bf16.mxu0 0
        %534 = vmatpush2.bf16.msra.mxu0 0
        %535 = vmatprep.subr.bf16.mxu0 0
        %536 = vmatpush2.bf16.msra.mxu0 0
        %537 = vmatprep.subr.bf16.mxu0 0
        %538 = vmatpush2.bf16.msra.mxu0 0
        %539 = vmatprep.subr.bf16.mxu0 0
        %540 = vmatpush2.bf16.msra.mxu0 0
        %541 = vmatprep.subr.bf16.mxu0 0
        %542 = vmatpush2.bf16.msra.mxu0 0
        %543 = vmatprep.subr.bf16.mxu0 0
        %544 = vmatpush2.bf16.msra.mxu0 0
        %545 = vmatprep.subr.bf16.mxu0 0
        %546 = vmatpush2.bf16.msra.mxu0 0
        %547 = vmatprep.subr.bf16.mxu0 0
        %548 = vmatpush2.bf16.msra.mxu0 0
        %549 = vmatprep.mubr.bf16.mxu0 0
        %550 = vmatmul.mubr.bf16.gmra.mxu0 %v503
        %v551 = vpop.f32.mrf.mxu0
        %v552 = vadd.f32 %v472, %v551
        %v553 = vpop.f32.mrf.mxu0
        %v554 = vpop.f32.mrf.mxu0
        %v555 = vadd.f32 %v475, %v554
        %v556 = vpop.f32.mrf.mxu0
        %557 = vmatprep.mubr.bf16.mxu0 0
        %558 = vmatmul.mubr.bf16.gmra.mxu0 %v506
        %v559 = vpop.f32.mrf.mxu0
        %v560 = vadd.f32 %v480, %v559
        %v561 = vpop.f32.mrf.mxu0
        %v562 = vpop.f32.mrf.mxu0
        %v563 = vadd.f32 %v483, %v562
        %v564 = vpop.f32.mrf.mxu0
        %565 = vmatprep.mubr.bf16.mxu0 0
        %566 = vmatmul.mubr.bf16.gmra.mxu0 %v509
        %v567 = vpop.f32.mrf.mxu0
        %v568 = vadd.f32 %v488, %v567
        %v569 = vpop.f32.mrf.mxu0
        %v570 = vpop.f32.mrf.mxu0
        %v571 = vadd.f32 %v491, %v570
        %v572 = vpop.f32.mrf.mxu0
        %573 = vmatprep.mubr.bf16.mxu0 0
        %574 = vmatmul.mubr.bf16.gmra.mxu0 %v512
        %v575 = vpop.f32.mrf.mxu0
        %v576 = vadd.f32 %v496, %v575
        %v577 = vpop.f32.mrf.mxu0
        %v578 = vpop.f32.mrf.mxu0
        %v579 = vadd.f32 %v499, %v578
        %v580 = vpop.f32.mrf.mxu0
        %581 = vdwg.mxu0
        %v582 = vrot.slane %v257, 1
        %vm584 = vcmask 1046528
        %v585 = vrot.slane %v250, 1
        %v586 = vrot.slane %v251, 1
        %v587 = vsel %vm584, %v585, %v586
        %v588 = vrot.slane %v252, 1
        %v589 = vsel %vm584, %v586, %v588
        %v590 = vrot.slane %v253, 1
        %v591 = vsel %vm584, %v588, %v590
        %v592 = vrot.slane %v254, 1
        %v593 = vsel %vm584, %v590, %v592
        %v594 = vrot.slane %v255, 1
        %v595 = vsel %vm584, %v592, %v594
        %v596 = vrot.slane %v256, 1
        %v597 = vsel %vm584, %v594, %v596
        %v598 = vsel %vm584, %v596, %v582
        %v607 = vsel %vm584, %v582, %v585
        %s608 = scalar_lea.vmem %s1, 128
        %v609 = vld [vmem:[%s608] sm:$0xff]
        %v610 = vld [vmem:[%s608 + $0x8] sm:$0xff]
        %v611 = vld [vmem:[%s608 + $0x10] sm:$0xff]
        %v612 = vld [vmem:[%s608 + $0x18] sm:$0xff]
        %v613 = vld [vmem:[%s608 + $0x20] sm:$0xff]
        %v614 = vld [vmem:[%s608 + $0x28] sm:$0xff]
        %v615 = vld [vmem:[%s608 + $0x30] sm:$0xff]
        %v616 = vld [vmem:[%s608 + $0x38] sm:$0xff]
        %618 = vset.pattern.permute.xlu0 0
        %619 = vperm.xlu0 %618, %v609
        %v620 = vpop.permute.xlu0 %619
        %623 = vset.pattern.permute.xlu0 0
        %624 = vperm.xlu0 %623, %v610
        %v625 = vpop.permute.xlu0 %624
        %628 = vset.pattern.permute.xlu0 0
        %629 = vperm.xlu0 %628, %v611
        %v630 = vpop.permute.xlu0 %629
        %633 = vset.pattern.permute.xlu0 0
        %634 = vperm.xlu0 %633, %v612
        %v635 = vpop.permute.xlu0 %634
        %638 = vset.pattern.permute.xlu0 0
        %639 = vperm.xlu0 %638, %v613
        %v640 = vpop.permute.xlu0 %639
        %643 = vset.pattern.permute.xlu0 0
        %644 = vperm.xlu0 %643, %v614
        %v645 = vpop.permute.xlu0 %644
        %648 = vset.pattern.permute.xlu0 0
        %649 = vperm.xlu0 %648, %v615
        %v650 = vpop.permute.xlu0 %649
        %653 = vset.pattern.permute.xlu0 0
        %654 = vperm.xlu0 %653, %v616
        %v655 = vpop.permute.xlu0 %654
        %v657 = vmul.f32 %v607, %v620
        %v658 = vmul.f32 %v587, %v625
        %v659 = vmul.f32 %v589, %v630
        %v660 = vmul.f32 %v591, %v635
        %v661 = vmul.f32 %v593, %v640
        %v662 = vmul.f32 %v595, %v645
        %v663 = vmul.f32 %v597, %v650
        %v664 = vmul.f32 %v598, %v655
        %v665 = vpack.c.bf16 %v658, %v657
        %v666 = vpack.c.bf16 %v660, %v659
        %v667 = vpack.c.bf16 %v662, %v661
        %v668 = vpack.c.bf16 %v664, %v663
        %s669 = scalar_lea.vmem %s2, 8
        %v670 = vld [vmem:[%s669] sm:$0x7]
        %v671 = vpack.c.bf16 %v670, %v670
        %v673 = vsel %vm418, %v665, 0
        %v676 = vsel %vm418, %v666, 0
        %v679 = vsel %vm418, %v667, 0
        %v682 = vsel %vm418, %v668, 0
        %v685 = vand.u32 %v671, %v433
        %687 = vmatprep.subr.bf16.mxu0 0
        %688 = vmatpush1.bf16.msra.mxu0 0
        %689 = vmatprep.subr.bf16.mxu0 0
        %690 = vmatpush1.bf16.msra.mxu0 0
        %691 = vmatprep.subr.bf16.mxu0 0
        %692 = vmatpush1.bf16.msra.mxu0 0
        %693 = vmatprep.subr.bf16.mxu0 0
        %694 = vmatpush1.bf16.msra.mxu0 0
        %695 = vmatprep.subr.bf16.mxu0 0
        %696 = vmatpush1.bf16.msra.mxu0 0
        %697 = vmatprep.subr.bf16.mxu0 0
        %698 = vmatpush1.bf16.msra.mxu0 0
        %699 = vmatprep.subr.bf16.mxu0 0
        %700 = vmatpush1.bf16.msra.mxu0 0
        %701 = vmatprep.subr.bf16.mxu0 0
        %702 = vmatpush1.bf16.msra.mxu0 %v685
        %703 = vmatprep.subr.bf16.mxu0 0
        %704 = vmatpush2.bf16.msra.mxu0 0
        %705 = vmatprep.subr.bf16.mxu0 0
        %706 = vmatpush2.bf16.msra.mxu0 0
        %707 = vmatprep.subr.bf16.mxu0 0
        %708 = vmatpush2.bf16.msra.mxu0 0
        %709 = vmatprep.subr.bf16.mxu0 0
        %710 = vmatpush2.bf16.msra.mxu0 0
        %711 = vmatprep.subr.bf16.mxu0 0
        %712 = vmatpush2.bf16.msra.mxu0 0
        %713 = vmatprep.subr.bf16.mxu0 0
        %714 = vmatpush2.bf16.msra.mxu0 0
        %715 = vmatprep.subr.bf16.mxu0 0
        %716 = vmatpush2.bf16.msra.mxu0 0
        %717 = vmatprep.subr.bf16.mxu0 0
        %718 = vmatpush2.bf16.msra.mxu0 0
        %719 = vmatprep.mubr.bf16.mxu0 0
        %720 = vmatmul.mubr.bf16.gmra.mxu0 %v673
        %v721 = vpop.f32.mrf.mxu0
        %v722 = vadd.f32 0.0, %v721
        %v723 = vpop.f32.mrf.mxu0
        %v724 = vpop.f32.mrf.mxu0
        %v725 = vadd.f32 0.0, %v724
        %v726 = vpop.f32.mrf.mxu0
        %727 = vmatprep.mubr.bf16.mxu0 0
        %728 = vmatmul.mubr.bf16.gmra.mxu0 %v676
        %v729 = vpop.f32.mrf.mxu0
        %v730 = vadd.f32 0.0, %v729
        %v731 = vpop.f32.mrf.mxu0
        %v732 = vpop.f32.mrf.mxu0
        %v733 = vadd.f32 0.0, %v732
        %v734 = vpop.f32.mrf.mxu0
        %735 = vmatprep.mubr.bf16.mxu0 0
        %736 = vmatmul.mubr.bf16.gmra.mxu0 %v679
        %v737 = vpop.f32.mrf.mxu0
        %v738 = vadd.f32 0.0, %v737
        %v739 = vpop.f32.mrf.mxu0
        %v740 = vpop.f32.mrf.mxu0
        %v741 = vadd.f32 0.0, %v740
        %v742 = vpop.f32.mrf.mxu0
        %743 = vmatprep.mubr.bf16.mxu0 0
        %744 = vmatmul.mubr.bf16.gmra.mxu0 %v682
        %v745 = vpop.f32.mrf.mxu0
        %v746 = vadd.f32 0.0, %v745
        %v747 = vpop.f32.mrf.mxu0
        %v748 = vpop.f32.mrf.mxu0
        %v749 = vadd.f32 0.0, %v748
        %v750 = vpop.f32.mrf.mxu0
        %751 = vdwg.mxu0
        %v752 = vadd.f32 %v552, %v722
        %v753 = vadd.f32 %v555, %v725
        %v754 = vadd.f32 %v560, %v730
        %v755 = vadd.f32 %v563, %v733
        %v756 = vadd.f32 %v568, %v738
        %v757 = vadd.f32 %v571, %v741
        %v758 = vadd.f32 %v576, %v746
        %v759 = vadd.f32 %v579, %v749
        %s760 = scalar_lea.vmem %s1, 192
        %v761 = vld [vmem:[%s760] sm:$0xff]
        %v762 = vld [vmem:[%s760 + $0x8] sm:$0xff]
        %v763 = vld [vmem:[%s760 + $0x10] sm:$0xff]
        %v764 = vld [vmem:[%s760 + $0x18] sm:$0xff]
        %v765 = vld [vmem:[%s760 + $0x20] sm:$0xff]
        %v766 = vld [vmem:[%s760 + $0x28] sm:$0xff]
        %v767 = vld [vmem:[%s760 + $0x30] sm:$0xff]
        %v768 = vld [vmem:[%s760 + $0x38] sm:$0xff]
        %770 = vset.pattern.permute.xlu0 0
        %771 = vperm.xlu0 %770, %v761
        %v772 = vpop.permute.xlu0 %771
        %775 = vset.pattern.permute.xlu0 0
        %776 = vperm.xlu0 %775, %v762
        %v777 = vpop.permute.xlu0 %776
        %780 = vset.pattern.permute.xlu0 0
        %781 = vperm.xlu0 %780, %v763
        %v782 = vpop.permute.xlu0 %781
        %785 = vset.pattern.permute.xlu0 0
        %786 = vperm.xlu0 %785, %v764
        %v787 = vpop.permute.xlu0 %786
        %790 = vset.pattern.permute.xlu0 0
        %791 = vperm.xlu0 %790, %v765
        %v792 = vpop.permute.xlu0 %791
        %795 = vset.pattern.permute.xlu0 0
        %796 = vperm.xlu0 %795, %v766
        %v797 = vpop.permute.xlu0 %796
        %800 = vset.pattern.permute.xlu0 0
        %801 = vperm.xlu0 %800, %v767
        %v802 = vpop.permute.xlu0 %801
        %805 = vset.pattern.permute.xlu0 0
        %806 = vperm.xlu0 %805, %v768
        %v807 = vpop.permute.xlu0 %806
        %v809 = vmul.f32 %v291, %v772
        %v810 = vmul.f32 %v274, %v777
        %v811 = vmul.f32 %v276, %v782
        %v812 = vmul.f32 %v278, %v787
        %v813 = vmul.f32 %v280, %v792
        %v814 = vmul.f32 %v282, %v797
        %v815 = vmul.f32 %v283, %v802
        %v816 = vmul.f32 %v263, %v807
        %v817 = vpack.c.bf16 %v810, %v809
        %v818 = vpack.c.bf16 %v812, %v811
        %v819 = vpack.c.bf16 %v814, %v813
        %v820 = vpack.c.bf16 %v816, %v815
        %s821 = scalar_lea.vmem %s2, 12
        %v822 = vld [vmem:[%s821] sm:$0x7]
        %v823 = vpack.c.bf16 %v822, %v822
        %v825 = vsel %vm418, %v817, 0
        %v828 = vsel %vm418, %v818, 0
        %v831 = vsel %vm418, %v819, 0
        %v834 = vsel %vm418, %v820, 0
        %v837 = vand.u32 %v823, %v433
        %839 = vmatprep.subr.bf16.mxu0 0
        %840 = vmatpush1.bf16.msra.mxu0 0
        %841 = vmatprep.subr.bf16.mxu0 0
        %842 = vmatpush1.bf16.msra.mxu0 0
        %843 = vmatprep.subr.bf16.mxu0 0
        %844 = vmatpush1.bf16.msra.mxu0 0
        %845 = vmatprep.subr.bf16.mxu0 0
        %846 = vmatpush1.bf16.msra.mxu0 0
        %847 = vmatprep.subr.bf16.mxu0 0
        %848 = vmatpush1.bf16.msra.mxu0 0
        %849 = vmatprep.subr.bf16.mxu0 0
        %850 = vmatpush1.bf16.msra.mxu0 0
        %851 = vmatprep.subr.bf16.mxu0 0
        %852 = vmatpush1.bf16.msra.mxu0 0
        %853 = vmatprep.subr.bf16.mxu0 0
        %854 = vmatpush1.bf16.msra.mxu0 %v837
        %855 = vmatprep.subr.bf16.mxu0 0
        %856 = vmatpush2.bf16.msra.mxu0 0
        %857 = vmatprep.subr.bf16.mxu0 0
        %858 = vmatpush2.bf16.msra.mxu0 0
        %859 = vmatprep.subr.bf16.mxu0 0
        %860 = vmatpush2.bf16.msra.mxu0 0
        %861 = vmatprep.subr.bf16.mxu0 0
        %862 = vmatpush2.bf16.msra.mxu0 0
        %863 = vmatprep.subr.bf16.mxu0 0
        %864 = vmatpush2.bf16.msra.mxu0 0
        %865 = vmatprep.subr.bf16.mxu0 0
        %866 = vmatpush2.bf16.msra.mxu0 0
        %867 = vmatprep.subr.bf16.mxu0 0
        %868 = vmatpush2.bf16.msra.mxu0 0
        %869 = vmatprep.subr.bf16.mxu0 0
        %870 = vmatpush2.bf16.msra.mxu0 0
        %871 = vmatprep.mubr.bf16.mxu0 0
        %872 = vmatmul.mubr.bf16.gmra.mxu0 %v825
        %v873 = vpop.f32.mrf.mxu0
        %v874 = vadd.f32 0.0, %v873
        %v875 = vpop.f32.mrf.mxu0
        %v876 = vpop.f32.mrf.mxu0
        %v877 = vadd.f32 0.0, %v876
        %v878 = vpop.f32.mrf.mxu0
        %879 = vmatprep.mubr.bf16.mxu0 0
        %880 = vmatmul.mubr.bf16.gmra.mxu0 %v828
        %v881 = vpop.f32.mrf.mxu0
        %v882 = vadd.f32 0.0, %v881
        %v883 = vpop.f32.mrf.mxu0
        %v884 = vpop.f32.mrf.mxu0
        %v885 = vadd.f32 0.0, %v884
        %v886 = vpop.f32.mrf.mxu0
        %887 = vmatprep.mubr.bf16.mxu0 0
        %888 = vmatmul.mubr.bf16.gmra.mxu0 %v831
        %v889 = vpop.f32.mrf.mxu0
        %v890 = vadd.f32 0.0, %v889
        %v891 = vpop.f32.mrf.mxu0
        %v892 = vpop.f32.mrf.mxu0
        %v893 = vadd.f32 0.0, %v892
        %v894 = vpop.f32.mrf.mxu0
        %895 = vmatprep.mubr.bf16.mxu0 0
        %896 = vmatmul.mubr.bf16.gmra.mxu0 %v834
        %v897 = vpop.f32.mrf.mxu0
        %v898 = vadd.f32 0.0, %v897
        %v899 = vpop.f32.mrf.mxu0
        %v900 = vpop.f32.mrf.mxu0
        %v901 = vadd.f32 0.0, %v900
        %v902 = vpop.f32.mrf.mxu0
        %903 = vdwg.mxu0
        %v904 = vadd.f32 %v752, %v874
        %v905 = vadd.f32 %v753, %v877
        %v906 = vadd.f32 %v754, %v882
        %v907 = vadd.f32 %v755, %v885
        %v908 = vadd.f32 %v756, %v890
        %v909 = vadd.f32 %v757, %v893
        %v910 = vadd.f32 %v758, %v898
        %v911 = vadd.f32 %v759, %v901
        %v912 = vpack.c.bf16 %v251, %v250
        %v913 = vpack.c.bf16 %v253, %v252
        %v914 = vpack.c.bf16 %v255, %v254
        %v915 = vpack.c.bf16 %v257, %v256
        %s916 = scalar_lea.vmem %s2, 16
        %v917 = vld [vmem:[%s916] sm:$0x7]
        %v918 = vpack.c.bf16 %v917, %v917
        %v920 = vsel %vm418, %v912, 0
        %v923 = vsel %vm418, %v913, 0
        %v926 = vsel %vm418, %v914, 0
        %v929 = vsel %vm418, %v915, 0
        %v932 = vand.u32 %v918, %v433
        %934 = vmatprep.subr.bf16.mxu0 0
        %935 = vmatpush1.bf16.msra.mxu0 0
        %936 = vmatprep.subr.bf16.mxu0 0
        %937 = vmatpush1.bf16.msra.mxu0 0
        %938 = vmatprep.subr.bf16.mxu0 0
        %939 = vmatpush1.bf16.msra.mxu0 0
        %940 = vmatprep.subr.bf16.mxu0 0
        %941 = vmatpush1.bf16.msra.mxu0 0
        %942 = vmatprep.subr.bf16.mxu0 0
        %943 = vmatpush1.bf16.msra.mxu0 0
        %944 = vmatprep.subr.bf16.mxu0 0
        %945 = vmatpush1.bf16.msra.mxu0 0
        %946 = vmatprep.subr.bf16.mxu0 0
        %947 = vmatpush1.bf16.msra.mxu0 0
        %948 = vmatprep.subr.bf16.mxu0 0
        %949 = vmatpush1.bf16.msra.mxu0 %v932
        %950 = vmatprep.subr.bf16.mxu0 0
        %951 = vmatpush2.bf16.msra.mxu0 0
        %952 = vmatprep.subr.bf16.mxu0 0
        %953 = vmatpush2.bf16.msra.mxu0 0
        %954 = vmatprep.subr.bf16.mxu0 0
        %955 = vmatpush2.bf16.msra.mxu0 0
        %956 = vmatprep.subr.bf16.mxu0 0
        %957 = vmatpush2.bf16.msra.mxu0 0
        %958 = vmatprep.subr.bf16.mxu0 0
        %959 = vmatpush2.bf16.msra.mxu0 0
        %960 = vmatprep.subr.bf16.mxu0 0
        %961 = vmatpush2.bf16.msra.mxu0 0
        %962 = vmatprep.subr.bf16.mxu0 0
        %963 = vmatpush2.bf16.msra.mxu0 0
        %964 = vmatprep.subr.bf16.mxu0 0
        %965 = vmatpush2.bf16.msra.mxu0 0
        %966 = vmatprep.mubr.bf16.mxu0 0
        %967 = vmatmul.mubr.bf16.gmra.mxu0 %v920
        %v968 = vpop.f32.mrf.mxu0
        %v969 = vadd.f32 0.0, %v968
        %v970 = vpop.f32.mrf.mxu0
        %v971 = vpop.f32.mrf.mxu0
        %v972 = vadd.f32 0.0, %v971
        %v973 = vpop.f32.mrf.mxu0
        %974 = vmatprep.mubr.bf16.mxu0 0
        %975 = vmatmul.mubr.bf16.gmra.mxu0 %v923
        %v976 = vpop.f32.mrf.mxu0
        %v977 = vadd.f32 0.0, %v976
        %v978 = vpop.f32.mrf.mxu0
        %v979 = vpop.f32.mrf.mxu0
        %v980 = vadd.f32 0.0, %v979
        %v981 = vpop.f32.mrf.mxu0
        %982 = vmatprep.mubr.bf16.mxu0 0
        %983 = vmatmul.mubr.bf16.gmra.mxu0 %v926
        %v984 = vpop.f32.mrf.mxu0
        %v985 = vadd.f32 0.0, %v984
        %v986 = vpop.f32.mrf.mxu0
        %v987 = vpop.f32.mrf.mxu0
        %v988 = vadd.f32 0.0, %v987
        %v989 = vpop.f32.mrf.mxu0
        %990 = vmatprep.mubr.bf16.mxu0 0
        %991 = vmatmul.mubr.bf16.gmra.mxu0 %v929
        %v992 = vpop.f32.mrf.mxu0
        %v993 = vadd.f32 0.0, %v992
        %v994 = vpop.f32.mrf.mxu0
        %v995 = vpop.f32.mrf.mxu0
        %v996 = vadd.f32 0.0, %v995
        %v997 = vpop.f32.mrf.mxu0
        %998 = vdwg.mxu0
        %v999 = vadd.f32 %v904, %v969
        %v1000 = vadd.f32 %v905, %v972
        %v1001 = vadd.f32 %v906, %v977
        %v1002 = vadd.f32 %v907, %v980
        %v1003 = vadd.f32 %v908, %v985
        %v1004 = vadd.f32 %v909, %v988
        %v1005 = vadd.f32 %v910, %v993
        %v1006 = vadd.f32 %v911, %v996
        %s1007 = scalar_lea.vmem %s1, 320
        %v1008 = vld [vmem:[%s1007] sm:$0xff]
        %v1009 = vld [vmem:[%s1007 + $0x8] sm:$0xff]
        %v1010 = vld [vmem:[%s1007 + $0x10] sm:$0xff]
        %v1011 = vld [vmem:[%s1007 + $0x18] sm:$0xff]
        %v1012 = vld [vmem:[%s1007 + $0x20] sm:$0xff]
        %v1013 = vld [vmem:[%s1007 + $0x28] sm:$0xff]
        %v1014 = vld [vmem:[%s1007 + $0x30] sm:$0xff]
        %v1015 = vld [vmem:[%s1007 + $0x38] sm:$0xff]
        %1017 = vset.pattern.permute.xlu0 0
        %1018 = vperm.xlu0 %1017, %v1008
        %v1019 = vpop.permute.xlu0 %1018
        %1022 = vset.pattern.permute.xlu0 0
        %1023 = vperm.xlu0 %1022, %v1009
        %v1024 = vpop.permute.xlu0 %1023
        %1027 = vset.pattern.permute.xlu0 0
        %1028 = vperm.xlu0 %1027, %v1010
        %v1029 = vpop.permute.xlu0 %1028
        %1032 = vset.pattern.permute.xlu0 0
        %1033 = vperm.xlu0 %1032, %v1011
        %v1034 = vpop.permute.xlu0 %1033
        %1037 = vset.pattern.permute.xlu0 0
        %1038 = vperm.xlu0 %1037, %v1012
        %v1039 = vpop.permute.xlu0 %1038
        %1042 = vset.pattern.permute.xlu0 0
        %1043 = vperm.xlu0 %1042, %v1013
        %v1044 = vpop.permute.xlu0 %1043
        %1047 = vset.pattern.permute.xlu0 0
        %1048 = vperm.xlu0 %1047, %v1014
        %v1049 = vpop.permute.xlu0 %1048
        %1052 = vset.pattern.permute.xlu0 0
        %1053 = vperm.xlu0 %1052, %v1015
        %v1054 = vpop.permute.xlu0 %1053
        %v1056 = vmul.f32 %v587, %v1019
        %v1057 = vmul.f32 %v589, %v1024
        %v1058 = vmul.f32 %v591, %v1029
        %v1059 = vmul.f32 %v593, %v1034
        %v1060 = vmul.f32 %v595, %v1039
        %v1061 = vmul.f32 %v597, %v1044
        %v1062 = vmul.f32 %v598, %v1049
        %v1063 = vmul.f32 %v607, %v1054
        %v1064 = vpack.c.bf16 %v1057, %v1056
        %v1065 = vpack.c.bf16 %v1059, %v1058
        %v1066 = vpack.c.bf16 %v1061, %v1060
        %v1067 = vpack.c.bf16 %v1063, %v1062
        %s1068 = scalar_lea.vmem %s2, 20
        %v1069 = vld [vmem:[%s1068] sm:$0x7]
        %v1070 = vpack.c.bf16 %v1069, %v1069
        %v1072 = vsel %vm418, %v1064, 0
        %v1075 = vsel %vm418, %v1065, 0
        %v1078 = vsel %vm418, %v1066, 0
        %v1081 = vsel %vm418, %v1067, 0
        %v1084 = vand.u32 %v1070, %v433
        %1086 = vmatprep.subr.bf16.mxu0 0
        %1087 = vmatpush1.bf16.msra.mxu0 0
        %1088 = vmatprep.subr.bf16.mxu0 0
        %1089 = vmatpush1.bf16.msra.mxu0 0
        %1090 = vmatprep.subr.bf16.mxu0 0
        %1091 = vmatpush1.bf16.msra.mxu0 0
        %1092 = vmatprep.subr.bf16.mxu0 0
        %1093 = vmatpush1.bf16.msra.mxu0 0
        %1094 = vmatprep.subr.bf16.mxu0 0
        %1095 = vmatpush1.bf16.msra.mxu0 0
        %1096 = vmatprep.subr.bf16.mxu0 0
        %1097 = vmatpush1.bf16.msra.mxu0 0
        %1098 = vmatprep.subr.bf16.mxu0 0
        %1099 = vmatpush1.bf16.msra.mxu0 0
        %1100 = vmatprep.subr.bf16.mxu0 0
        %1101 = vmatpush1.bf16.msra.mxu0 %v1084
        %1102 = vmatprep.subr.bf16.mxu0 0
        %1103 = vmatpush2.bf16.msra.mxu0 0
        %1104 = vmatprep.subr.bf16.mxu0 0
        %1105 = vmatpush2.bf16.msra.mxu0 0
        %1106 = vmatprep.subr.bf16.mxu0 0
        %1107 = vmatpush2.bf16.msra.mxu0 0
        %1108 = vmatprep.subr.bf16.mxu0 0
        %1109 = vmatpush2.bf16.msra.mxu0 0
        %1110 = vmatprep.subr.bf16.mxu0 0
        %1111 = vmatpush2.bf16.msra.mxu0 0
        %1112 = vmatprep.subr.bf16.mxu0 0
        %1113 = vmatpush2.bf16.msra.mxu0 0
        %1114 = vmatprep.subr.bf16.mxu0 0
        %1115 = vmatpush2.bf16.msra.mxu0 0
        %1116 = vmatprep.subr.bf16.mxu0 0
        %1117 = vmatpush2.bf16.msra.mxu0 0
        %1118 = vmatprep.mubr.bf16.mxu0 0
        %1119 = vmatmul.mubr.bf16.gmra.mxu0 %v1072
        %v1120 = vpop.f32.mrf.mxu0
        %v1121 = vadd.f32 0.0, %v1120
        %v1122 = vpop.f32.mrf.mxu0
        %v1123 = vpop.f32.mrf.mxu0
        %v1124 = vadd.f32 0.0, %v1123
        %v1125 = vpop.f32.mrf.mxu0
        %1126 = vmatprep.mubr.bf16.mxu0 0
        %1127 = vmatmul.mubr.bf16.gmra.mxu0 %v1075
        %v1128 = vpop.f32.mrf.mxu0
        %v1129 = vadd.f32 0.0, %v1128
        %v1130 = vpop.f32.mrf.mxu0
        %v1131 = vpop.f32.mrf.mxu0
        %v1132 = vadd.f32 0.0, %v1131
        %v1133 = vpop.f32.mrf.mxu0
        %1134 = vmatprep.mubr.bf16.mxu0 0
        %1135 = vmatmul.mubr.bf16.gmra.mxu0 %v1078
        %v1136 = vpop.f32.mrf.mxu0
        %v1137 = vadd.f32 0.0, %v1136
        %v1138 = vpop.f32.mrf.mxu0
        %v1139 = vpop.f32.mrf.mxu0
        %v1140 = vadd.f32 0.0, %v1139
        %v1141 = vpop.f32.mrf.mxu0
        %1142 = vmatprep.mubr.bf16.mxu0 0
        %1143 = vmatmul.mubr.bf16.gmra.mxu0 %v1081
        %v1144 = vpop.f32.mrf.mxu0
        %v1145 = vadd.f32 0.0, %v1144
        %v1146 = vpop.f32.mrf.mxu0
        %v1147 = vpop.f32.mrf.mxu0
        %v1148 = vadd.f32 0.0, %v1147
        %v1149 = vpop.f32.mrf.mxu0
        %1150 = vdwg.mxu0
        %v1151 = vadd.f32 %v999, %v1121
        %v1152 = vadd.f32 %v1000, %v1124
        %v1153 = vadd.f32 %v1001, %v1129
        %v1154 = vadd.f32 %v1002, %v1132
        %v1155 = vadd.f32 %v1003, %v1137
        %v1156 = vadd.f32 %v1004, %v1140
        %v1157 = vadd.f32 %v1005, %v1145
        %v1158 = vadd.f32 %v1006, %v1148
        %s1159 = scalar_lea.vmem %s1, 384
        %v1160 = vld [vmem:[%s1159] sm:$0xff]
        %v1161 = vld [vmem:[%s1159 + $0x8] sm:$0xff]
        %v1162 = vld [vmem:[%s1159 + $0x10] sm:$0xff]
        %v1163 = vld [vmem:[%s1159 + $0x18] sm:$0xff]
        %v1164 = vld [vmem:[%s1159 + $0x20] sm:$0xff]
        %v1165 = vld [vmem:[%s1159 + $0x28] sm:$0xff]
        %v1166 = vld [vmem:[%s1159 + $0x30] sm:$0xff]
        %v1167 = vld [vmem:[%s1159 + $0x38] sm:$0xff]
        %1169 = vset.pattern.permute.xlu0 0
        %1170 = vperm.xlu0 %1169, %v1160
        %v1171 = vpop.permute.xlu0 %1170
        %1174 = vset.pattern.permute.xlu0 0
        %1175 = vperm.xlu0 %1174, %v1161
        %v1176 = vpop.permute.xlu0 %1175
        %1179 = vset.pattern.permute.xlu0 0
        %1180 = vperm.xlu0 %1179, %v1162
        %v1181 = vpop.permute.xlu0 %1180
        %1184 = vset.pattern.permute.xlu0 0
        %1185 = vperm.xlu0 %1184, %v1163
        %v1186 = vpop.permute.xlu0 %1185
        %1189 = vset.pattern.permute.xlu0 0
        %1190 = vperm.xlu0 %1189, %v1164
        %v1191 = vpop.permute.xlu0 %1190
        %1194 = vset.pattern.permute.xlu0 0
        %1195 = vperm.xlu0 %1194, %v1165
        %v1196 = vpop.permute.xlu0 %1195
        %1199 = vset.pattern.permute.xlu0 0
        %1200 = vperm.xlu0 %1199, %v1166
        %v1201 = vpop.permute.xlu0 %1200
        %1204 = vset.pattern.permute.xlu0 0
        %1205 = vperm.xlu0 %1204, %v1167
        %v1206 = vpop.permute.xlu0 %1205
        %v1208 = vmul.f32 %v274, %v1171
        %v1209 = vmul.f32 %v276, %v1176
        %v1210 = vmul.f32 %v278, %v1181
        %v1211 = vmul.f32 %v280, %v1186
        %v1212 = vmul.f32 %v282, %v1191
        %v1213 = vmul.f32 %v283, %v1196
        %v1214 = vmul.f32 %v263, %v1201
        %v1215 = vmul.f32 %v291, %v1206
        %v1216 = vpack.c.bf16 %v1209, %v1208
        %v1217 = vpack.c.bf16 %v1211, %v1210
        %v1218 = vpack.c.bf16 %v1213, %v1212
        %v1219 = vpack.c.bf16 %v1215, %v1214
        %s1220 = scalar_lea.vmem %s2, 24
        %v1221 = vld [vmem:[%s1220] sm:$0x7]
        %v1222 = vpack.c.bf16 %v1221, %v1221
        %v1224 = vsel %vm418, %v1216, 0
        %v1227 = vsel %vm418, %v1217, 0
        %v1230 = vsel %vm418, %v1218, 0
        %v1233 = vsel %vm418, %v1219, 0
        %v1236 = vand.u32 %v1222, %v433
        %1238 = vmatprep.subr.bf16.mxu0 0
        %1239 = vmatpush1.bf16.msra.mxu0 0
        %1240 = vmatprep.subr.bf16.mxu0 0
        %1241 = vmatpush1.bf16.msra.mxu0 0
        %1242 = vmatprep.subr.bf16.mxu0 0
        %1243 = vmatpush1.bf16.msra.mxu0 0
        %1244 = vmatprep.subr.bf16.mxu0 0
        %1245 = vmatpush1.bf16.msra.mxu0 0
        %1246 = vmatprep.subr.bf16.mxu0 0
        %1247 = vmatpush1.bf16.msra.mxu0 0
        %1248 = vmatprep.subr.bf16.mxu0 0
        %1249 = vmatpush1.bf16.msra.mxu0 0
        %1250 = vmatprep.subr.bf16.mxu0 0
        %1251 = vmatpush1.bf16.msra.mxu0 0
        %1252 = vmatprep.subr.bf16.mxu0 0
        %1253 = vmatpush1.bf16.msra.mxu0 %v1236
        %1254 = vmatprep.subr.bf16.mxu0 0
        %1255 = vmatpush2.bf16.msra.mxu0 0
        %1256 = vmatprep.subr.bf16.mxu0 0
        %1257 = vmatpush2.bf16.msra.mxu0 0
        %1258 = vmatprep.subr.bf16.mxu0 0
        %1259 = vmatpush2.bf16.msra.mxu0 0
        %1260 = vmatprep.subr.bf16.mxu0 0
        %1261 = vmatpush2.bf16.msra.mxu0 0
        %1262 = vmatprep.subr.bf16.mxu0 0
        %1263 = vmatpush2.bf16.msra.mxu0 0
        %1264 = vmatprep.subr.bf16.mxu0 0
        %1265 = vmatpush2.bf16.msra.mxu0 0
        %1266 = vmatprep.subr.bf16.mxu0 0
        %1267 = vmatpush2.bf16.msra.mxu0 0
        %1268 = vmatprep.subr.bf16.mxu0 0
        %1269 = vmatpush2.bf16.msra.mxu0 0
        %1270 = vmatprep.mubr.bf16.mxu0 0
        %1271 = vmatmul.mubr.bf16.gmra.mxu0 %v1224
        %v1272 = vpop.f32.mrf.mxu0
        %v1273 = vadd.f32 0.0, %v1272
        %v1274 = vpop.f32.mrf.mxu0
        %v1275 = vpop.f32.mrf.mxu0
        %v1276 = vadd.f32 0.0, %v1275
        %v1277 = vpop.f32.mrf.mxu0
        %1278 = vmatprep.mubr.bf16.mxu0 0
        %1279 = vmatmul.mubr.bf16.gmra.mxu0 %v1227
        %v1280 = vpop.f32.mrf.mxu0
        %v1281 = vadd.f32 0.0, %v1280
        %v1282 = vpop.f32.mrf.mxu0
        %v1283 = vpop.f32.mrf.mxu0
        %v1284 = vadd.f32 0.0, %v1283
        %v1285 = vpop.f32.mrf.mxu0
        %1286 = vmatprep.mubr.bf16.mxu0 0
        %1287 = vmatmul.mubr.bf16.gmra.mxu0 %v1230
        %v1288 = vpop.f32.mrf.mxu0
        %v1289 = vadd.f32 0.0, %v1288
        %v1290 = vpop.f32.mrf.mxu0
        %v1291 = vpop.f32.mrf.mxu0
        %v1292 = vadd.f32 0.0, %v1291
        %v1293 = vpop.f32.mrf.mxu0
        %1294 = vmatprep.mubr.bf16.mxu0 0
        %1295 = vmatmul.mubr.bf16.gmra.mxu0 %v1233
        %v1296 = vpop.f32.mrf.mxu0
        %v1297 = vadd.f32 0.0, %v1296
        %v1298 = vpop.f32.mrf.mxu0
        %v1299 = vpop.f32.mrf.mxu0
        %v1300 = vadd.f32 0.0, %v1299
        %v1301 = vpop.f32.mrf.mxu0
        %1302 = vdwg.mxu0
        %v1303 = vadd.f32 %v1151, %v1273
        %v1304 = vadd.f32 %v1152, %v1276
        %v1305 = vadd.f32 %v1153, %v1281
        %v1306 = vadd.f32 %v1154, %v1284
        %v1307 = vadd.f32 %v1155, %v1289
        %v1308 = vadd.f32 %v1156, %v1292
        %v1309 = vadd.f32 %v1157, %v1297
        %v1310 = vadd.f32 %v1158, %v1300
        %s1311 = scalar_lea.vmem %s1, 448
        %v1312 = vld [vmem:[%s1311] sm:$0xff]
        %v1313 = vld [vmem:[%s1311 + $0x8] sm:$0xff]
        %v1314 = vld [vmem:[%s1311 + $0x10] sm:$0xff]
        %v1315 = vld [vmem:[%s1311 + $0x18] sm:$0xff]
        %v1316 = vld [vmem:[%s1311 + $0x20] sm:$0xff]
        %v1317 = vld [vmem:[%s1311 + $0x28] sm:$0xff]
        %v1318 = vld [vmem:[%s1311 + $0x30] sm:$0xff]
        %v1319 = vld [vmem:[%s1311 + $0x38] sm:$0xff]
        %1321 = vset.pattern.permute.xlu0 0
        %1322 = vperm.xlu0 %1321, %v1312
        %v1323 = vpop.permute.xlu0 %1322
        %1326 = vset.pattern.permute.xlu0 0
        %1327 = vperm.xlu0 %1326, %v1313
        %v1328 = vpop.permute.xlu0 %1327
        %1331 = vset.pattern.permute.xlu0 0
        %1332 = vperm.xlu0 %1331, %v1314
        %v1333 = vpop.permute.xlu0 %1332
        %1336 = vset.pattern.permute.xlu0 0
        %1337 = vperm.xlu0 %1336, %v1315
        %v1338 = vpop.permute.xlu0 %1337
        %1341 = vset.pattern.permute.xlu0 0
        %1342 = vperm.xlu0 %1341, %v1316
        %v1343 = vpop.permute.xlu0 %1342
        %1346 = vset.pattern.permute.xlu0 0
        %1347 = vperm.xlu0 %1346, %v1317
        %v1348 = vpop.permute.xlu0 %1347
        %1351 = vset.pattern.permute.xlu0 0
        %1352 = vperm.xlu0 %1351, %v1318
        %v1353 = vpop.permute.xlu0 %1352
        %1356 = vset.pattern.permute.xlu0 0
        %1357 = vperm.xlu0 %1356, %v1319
        %v1358 = vpop.permute.xlu0 %1357
        %v1360 = vmul.f32 %v251, %v1323
        %v1361 = vmul.f32 %v252, %v1328
        %v1362 = vmul.f32 %v253, %v1333
        %v1363 = vmul.f32 %v254, %v1338
        %v1364 = vmul.f32 %v255, %v1343
        %v1365 = vmul.f32 %v256, %v1348
        %v1366 = vmul.f32 %v257, %v1353
        %v1367 = vmul.f32 %v250, %v1358
        %v1368 = vpack.c.bf16 %v1361, %v1360
        %v1369 = vpack.c.bf16 %v1363, %v1362
        %v1370 = vpack.c.bf16 %v1365, %v1364
        %v1371 = vpack.c.bf16 %v1367, %v1366
        %s1372 = scalar_lea.vmem %s2, 28
        %v1373 = vld [vmem:[%s1372] sm:$0x7]
        %v1374 = vpack.c.bf16 %v1373, %v1373
        %v1376 = vsel %vm418, %v1368, 0
        %v1379 = vsel %vm418, %v1369, 0
        %v1382 = vsel %vm418, %v1370, 0
        %v1385 = vsel %vm418, %v1371, 0
        %v1388 = vand.u32 %v1374, %v433
        %1390 = vmatprep.subr.bf16.mxu0 0
        %1391 = vmatpush1.bf16.msra.mxu0 0
        %1392 = vmatprep.subr.bf16.mxu0 0
        %1393 = vmatpush1.bf16.msra.mxu0 0
        %1394 = vmatprep.subr.bf16.mxu0 0
        %1395 = vmatpush1.bf16.msra.mxu0 0
        %1396 = vmatprep.subr.bf16.mxu0 0
        %1397 = vmatpush1.bf16.msra.mxu0 0
        %1398 = vmatprep.subr.bf16.mxu0 0
        %1399 = vmatpush1.bf16.msra.mxu0 0
        %1400 = vmatprep.subr.bf16.mxu0 0
        %1401 = vmatpush1.bf16.msra.mxu0 0
        %1402 = vmatprep.subr.bf16.mxu0 0
        %1403 = vmatpush1.bf16.msra.mxu0 0
        %1404 = vmatprep.subr.bf16.mxu0 0
        %1405 = vmatpush1.bf16.msra.mxu0 %v1388
        %1406 = vmatprep.subr.bf16.mxu0 0
        %1407 = vmatpush2.bf16.msra.mxu0 0
        %1408 = vmatprep.subr.bf16.mxu0 0
        %1409 = vmatpush2.bf16.msra.mxu0 0
        %1410 = vmatprep.subr.bf16.mxu0 0
        %1411 = vmatpush2.bf16.msra.mxu0 0
        %1412 = vmatprep.subr.bf16.mxu0 0
        %1413 = vmatpush2.bf16.msra.mxu0 0
        %1414 = vmatprep.subr.bf16.mxu0 0
        %1415 = vmatpush2.bf16.msra.mxu0 0
        %1416 = vmatprep.subr.bf16.mxu0 0
        %1417 = vmatpush2.bf16.msra.mxu0 0
        %1418 = vmatprep.subr.bf16.mxu0 0
        %1419 = vmatpush2.bf16.msra.mxu0 0
        %1420 = vmatprep.subr.bf16.mxu0 0
        %1421 = vmatpush2.bf16.msra.mxu0 0
        %1422 = vmatprep.mubr.bf16.mxu0 0
        %1423 = vmatmul.mubr.bf16.gmra.mxu0 %v1376
        %v1424 = vpop.f32.mrf.mxu0
        %v1425 = vadd.f32 0.0, %v1424
        %v1426 = vpop.f32.mrf.mxu0
        %v1427 = vpop.f32.mrf.mxu0
        %v1428 = vadd.f32 0.0, %v1427
        %v1429 = vpop.f32.mrf.mxu0
        %1430 = vmatprep.mubr.bf16.mxu0 0
        %1431 = vmatmul.mubr.bf16.gmra.mxu0 %v1379
        %v1432 = vpop.f32.mrf.mxu0
        %v1433 = vadd.f32 0.0, %v1432
        %v1434 = vpop.f32.mrf.mxu0
        %v1435 = vpop.f32.mrf.mxu0
        %v1436 = vadd.f32 0.0, %v1435
        %v1437 = vpop.f32.mrf.mxu0
        %1438 = vmatprep.mubr.bf16.mxu0 0
        %1439 = vmatmul.mubr.bf16.gmra.mxu0 %v1382
        %v1440 = vpop.f32.mrf.mxu0
        %v1441 = vadd.f32 0.0, %v1440
        %v1442 = vpop.f32.mrf.mxu0
        %v1443 = vpop.f32.mrf.mxu0
        %v1444 = vadd.f32 0.0, %v1443
        %v1445 = vpop.f32.mrf.mxu0
        %1446 = vmatprep.mubr.bf16.mxu0 0
        %1447 = vmatmul.mubr.bf16.gmra.mxu0 %v1385
        %v1448 = vpop.f32.mrf.mxu0
        %v1449 = vadd.f32 0.0, %v1448
        %v1450 = vpop.f32.mrf.mxu0
        %v1451 = vpop.f32.mrf.mxu0
        %v1452 = vadd.f32 0.0, %v1451
        %v1453 = vpop.f32.mrf.mxu0
        %1454 = vdwg.mxu0
        %v1455 = vadd.f32 %v1303, %v1425
        %v1456 = vadd.f32 %v1304, %v1428
        %v1457 = vadd.f32 %v1305, %v1433
        %v1458 = vadd.f32 %v1306, %v1436
        %v1459 = vadd.f32 %v1307, %v1441
        %v1460 = vadd.f32 %v1308, %v1444
        %v1461 = vadd.f32 %v1309, %v1449
        %v1462 = vadd.f32 %v1310, %v1452
        %s1463 = scalar_lea.vmem %s1, 512
        %v1464 = vld [vmem:[%s1463] sm:$0xff]
        %v1465 = vld [vmem:[%s1463 + $0x8] sm:$0xff]
        %v1466 = vld [vmem:[%s1463 + $0x10] sm:$0xff]
        %v1467 = vld [vmem:[%s1463 + $0x18] sm:$0xff]
        %v1468 = vld [vmem:[%s1463 + $0x20] sm:$0xff]
        %v1469 = vld [vmem:[%s1463 + $0x28] sm:$0xff]
        %v1470 = vld [vmem:[%s1463 + $0x30] sm:$0xff]
        %v1471 = vld [vmem:[%s1463 + $0x38] sm:$0xff]
        %1473 = vset.pattern.permute.xlu0 0
        %1474 = vperm.xlu0 %1473, %v1464
        %v1475 = vpop.permute.xlu0 %1474
        %1478 = vset.pattern.permute.xlu0 0
        %1479 = vperm.xlu0 %1478, %v1465
        %v1480 = vpop.permute.xlu0 %1479
        %1483 = vset.pattern.permute.xlu0 0
        %1484 = vperm.xlu0 %1483, %v1466
        %v1485 = vpop.permute.xlu0 %1484
        %1488 = vset.pattern.permute.xlu0 0
        %1489 = vperm.xlu0 %1488, %v1467
        %v1490 = vpop.permute.xlu0 %1489
        %1493 = vset.pattern.permute.xlu0 0
        %1494 = vperm.xlu0 %1493, %v1468
        %v1495 = vpop.permute.xlu0 %1494
        %1498 = vset.pattern.permute.xlu0 0
        %1499 = vperm.xlu0 %1498, %v1469
        %v1500 = vpop.permute.xlu0 %1499
        %1503 = vset.pattern.permute.xlu0 0
        %1504 = vperm.xlu0 %1503, %v1470
        %v1505 = vpop.permute.xlu0 %1504
        %1508 = vset.pattern.permute.xlu0 0
        %1509 = vperm.xlu0 %1508, %v1471
        %v1510 = vpop.permute.xlu0 %1509
        %v1512 = vmul.f32 %v589, %v1475
        %v1513 = vmul.f32 %v591, %v1480
        %v1514 = vmul.f32 %v593, %v1485
        %v1515 = vmul.f32 %v595, %v1490
        %v1516 = vmul.f32 %v597, %v1495
        %v1517 = vmul.f32 %v598, %v1500
        %v1518 = vmul.f32 %v607, %v1505
        %v1519 = vmul.f32 %v587, %v1510
        %v1520 = vpack.c.bf16 %v1513, %v1512
        %v1521 = vpack.c.bf16 %v1515, %v1514
        %v1522 = vpack.c.bf16 %v1517, %v1516
        %v1523 = vpack.c.bf16 %v1519, %v1518
        %s1524 = scalar_lea.vmem %s2, 32
        %v1525 = vld [vmem:[%s1524] sm:$0x7]
        %v1526 = vpack.c.bf16 %v1525, %v1525
        %v1528 = vsel %vm418, %v1520, 0
        %v1531 = vsel %vm418, %v1521, 0
        %v1534 = vsel %vm418, %v1522, 0
        %v1537 = vsel %vm418, %v1523, 0
        %v1540 = vand.u32 %v1526, %v433
        %1542 = vmatprep.subr.bf16.mxu0 0
        %1543 = vmatpush1.bf16.msra.mxu0 0
        %1544 = vmatprep.subr.bf16.mxu0 0
        %1545 = vmatpush1.bf16.msra.mxu0 0
        %1546 = vmatprep.subr.bf16.mxu0 0
        %1547 = vmatpush1.bf16.msra.mxu0 0
        %1548 = vmatprep.subr.bf16.mxu0 0
        %1549 = vmatpush1.bf16.msra.mxu0 0
        %1550 = vmatprep.subr.bf16.mxu0 0
        %1551 = vmatpush1.bf16.msra.mxu0 0
        %1552 = vmatprep.subr.bf16.mxu0 0
        %1553 = vmatpush1.bf16.msra.mxu0 0
        %1554 = vmatprep.subr.bf16.mxu0 0
        %1555 = vmatpush1.bf16.msra.mxu0 0
        %1556 = vmatprep.subr.bf16.mxu0 0
        %1557 = vmatpush1.bf16.msra.mxu0 %v1540
        %1558 = vmatprep.subr.bf16.mxu0 0
        %1559 = vmatpush2.bf16.msra.mxu0 0
        %1560 = vmatprep.subr.bf16.mxu0 0
        %1561 = vmatpush2.bf16.msra.mxu0 0
        %1562 = vmatprep.subr.bf16.mxu0 0
        %1563 = vmatpush2.bf16.msra.mxu0 0
        %1564 = vmatprep.subr.bf16.mxu0 0
        %1565 = vmatpush2.bf16.msra.mxu0 0
        %1566 = vmatprep.subr.bf16.mxu0 0
        %1567 = vmatpush2.bf16.msra.mxu0 0
        %1568 = vmatprep.subr.bf16.mxu0 0
        %1569 = vmatpush2.bf16.msra.mxu0 0
        %1570 = vmatprep.subr.bf16.mxu0 0
        %1571 = vmatpush2.bf16.msra.mxu0 0
        %1572 = vmatprep.subr.bf16.mxu0 0
        %1573 = vmatpush2.bf16.msra.mxu0 0
        %1574 = vmatprep.mubr.bf16.mxu0 0
        %1575 = vmatmul.mubr.bf16.gmra.mxu0 %v1528
        %v1576 = vpop.f32.mrf.mxu0
        %v1577 = vadd.f32 0.0, %v1576
        %v1578 = vpop.f32.mrf.mxu0
        %v1579 = vpop.f32.mrf.mxu0
        %v1580 = vadd.f32 0.0, %v1579
        %v1581 = vpop.f32.mrf.mxu0
        %1582 = vmatprep.mubr.bf16.mxu0 0
        %1583 = vmatmul.mubr.bf16.gmra.mxu0 %v1531
        %v1584 = vpop.f32.mrf.mxu0
        %v1585 = vadd.f32 0.0, %v1584
        %v1586 = vpop.f32.mrf.mxu0
        %v1587 = vpop.f32.mrf.mxu0
        %v1588 = vadd.f32 0.0, %v1587
        %v1589 = vpop.f32.mrf.mxu0
        %1590 = vmatprep.mubr.bf16.mxu0 0
        %1591 = vmatmul.mubr.bf16.gmra.mxu0 %v1534
        %v1592 = vpop.f32.mrf.mxu0
        %v1593 = vadd.f32 0.0, %v1592
        %v1594 = vpop.f32.mrf.mxu0
        %v1595 = vpop.f32.mrf.mxu0
        %v1596 = vadd.f32 0.0, %v1595
        %v1597 = vpop.f32.mrf.mxu0
        %1598 = vmatprep.mubr.bf16.mxu0 0
        %1599 = vmatmul.mubr.bf16.gmra.mxu0 %v1537
        %v1600 = vpop.f32.mrf.mxu0
        %v1601 = vadd.f32 0.0, %v1600
        %v1602 = vpop.f32.mrf.mxu0
        %v1603 = vpop.f32.mrf.mxu0
        %v1604 = vadd.f32 0.0, %v1603
        %v1605 = vpop.f32.mrf.mxu0
        %1606 = vdwg.mxu0
        %v1607 = vadd.f32 %v1455, %v1577
        %v1608 = vadd.f32 %v1456, %v1580
        %v1609 = vadd.f32 %v1457, %v1585
        %v1610 = vadd.f32 %v1458, %v1588
        %v1611 = vadd.f32 %v1459, %v1593
        %v1612 = vadd.f32 %v1460, %v1596
        %v1613 = vadd.f32 %v1461, %v1601
        %v1614 = vadd.f32 %v1462, %v1604
        %v1615 = vld [vmem:[%s3] sm:$0x1]
        %v1617 = vlaneseq
        %v1618 = vshrl.u32 %v1617, 7
        %v1619 = vsub.s32 0, %v1618
        %v1620 = vrot.slane %v1615, %v1619
        %v1622 = vadd.f32 %v1607, %v1620
        %v1623 = vadd.f32 %v1608, %v1620
        %v1624 = vadd.f32 %v1609, %v1620
        %v1625 = vadd.f32 %v1610, %v1620
        %v1626 = vadd.f32 %v1611, %v1620
        %v1627 = vadd.f32 %v1612, %v1620
        %v1628 = vadd.f32 %v1613, %v1620
        %v1629 = vadd.f32 %v1614, %v1620
        %v1630 = vmax.f32 %v1622, 0.0
        %v1631 = vmax.f32 %v1623, 0.0
        %v1632 = vmax.f32 %v1624, 0.0
        %v1633 = vmax.f32 %v1625, 0.0
        %v1634 = vmax.f32 %v1626, 0.0
        %v1635 = vmax.f32 %v1627, 0.0
        %v1636 = vmax.f32 %v1628, 0.0
        %v1637 = vmax.f32 %v1629, 0.0
        %v1640 = vrot.slane %v1636, 7
        %v1641 = vrot.slane %v1637, 7
        %v1642 = vsel %vm260, %v1640, %v1641
        %v1651 = vrot.slane %v1630, 7
        %v1652 = vrot.slane %v1631, 7
        %v1653 = vsel %vm260, %v1651, %v1652
        %v1654 = vrot.slane %v1632, 7
        %v1655 = vsel %vm260, %v1652, %v1654
        %v1656 = vrot.slane %v1633, 7
        %v1657 = vsel %vm260, %v1654, %v1656
        %v1658 = vrot.slane %v1634, 7
        %v1659 = vsel %vm260, %v1656, %v1658
        %v1660 = vrot.slane %v1635, 7
        %v1661 = vsel %vm260, %v1658, %v1660
        %v1662 = vsel %vm260, %v1660, %v1640
        %v1670 = vsel %vm260, %v1641, %v1651
        %v1671 = vmul.f32 %v1642, %v303
        %v1672 = vmul.f32 %v1670, %v308
        %v1673 = vmul.f32 %v1653, %v313
        %v1674 = vmul.f32 %v1655, %v318
        %v1675 = vmul.f32 %v1657, %v323
        %v1676 = vmul.f32 %v1659, %v328
        %v1677 = vmul.f32 %v1661, %v333
        %v1678 = vmul.f32 %v1662, %v338
        %v1679 = vpack.c.bf16 %v1672, %v1671
        %v1680 = vpack.c.bf16 %v1674, %v1673
        %v1681 = vpack.c.bf16 %v1676, %v1675
        %v1682 = vpack.c.bf16 %v1678, %v1677
        %v1683 = vld [vmem:[%s4] sm:$0x3f]
        %v1684 = vpack.c.bf16 %v1683, %v1683
        %v1685 = vmul.f32 %v1637, %v366
        %v1686 = vmul.f32 %v1630, %v371
        %v1687 = vmul.f32 %v1631, %v376
        %v1688 = vmul.f32 %v1632, %v381
        %v1689 = vmul.f32 %v1633, %v386
        %v1690 = vmul.f32 %v1634, %v391
        %v1691 = vmul.f32 %v1635, %v396
        %v1692 = vmul.f32 %v1636, %v401
        %v1693 = vpack.c.bf16 %v1686, %v1685
        %v1694 = vpack.c.bf16 %v1688, %v1687
        %v1695 = vpack.c.bf16 %v1690, %v1689
        %v1696 = vpack.c.bf16 %v1692, %v1691
        %s1697 = scalar_lea.vmem %s4, 8
        %v1698 = vld [vmem:[%s1697] sm:$0x3f]
        %v1699 = vpack.c.bf16 %v1698, %v1698
        %vm1700 = vcmask 48128
        %v1702 = vsel %vm1700, %v1693, 0
        %v1705 = vsel %vm1700, %v1694, 0
        %v1708 = vsel %vm1700, %v1695, 0
        %v1711 = vsel %vm1700, %v1696, 0
        %vm1713 = vcmask 1042432
        %v1715 = vsel %vm1713, %v1699, 0
        %1717 = vmatprep.subr.bf16.mxu0 0
        %1718 = vmatpush1.bf16.msra.mxu0 0
        %1719 = vmatprep.subr.bf16.mxu0 0
        %1720 = vmatpush1.bf16.msra.mxu0 0
        %1721 = vmatprep.subr.bf16.mxu0 0
        %1722 = vmatpush1.bf16.msra.mxu0 0
        %1723 = vmatprep.subr.bf16.mxu0 0
        %1724 = vmatpush1.bf16.msra.mxu0 0
        %1725 = vmatprep.subr.bf16.mxu0 0
        %1726 = vmatpush1.bf16.msra.mxu0 0
        %1727 = vmatprep.subr.bf16.mxu0 0
        %1728 = vmatpush1.bf16.msra.mxu0 0
        %1729 = vmatprep.subr.bf16.mxu0 0
        %1730 = vmatpush1.bf16.msra.mxu0 0
        %1731 = vmatprep.subr.bf16.mxu0 0
        %1732 = vmatpush1.bf16.msra.mxu0 %v1715
        %1733 = vmatprep.subr.bf16.mxu0 0
        %1734 = vmatpush2.bf16.msra.mxu0 0
        %1735 = vmatprep.subr.bf16.mxu0 0
        %1736 = vmatpush2.bf16.msra.mxu0 0
        %1737 = vmatprep.subr.bf16.mxu0 0
        %1738 = vmatpush2.bf16.msra.mxu0 0
        %1739 = vmatprep.subr.bf16.mxu0 0
        %1740 = vmatpush2.bf16.msra.mxu0 0
        %1741 = vmatprep.subr.bf16.mxu0 0
        %1742 = vmatpush2.bf16.msra.mxu0 0
        %1743 = vmatprep.subr.bf16.mxu0 0
        %1744 = vmatpush2.bf16.msra.mxu0 0
        %1745 = vmatprep.subr.bf16.mxu0 0
        %1746 = vmatpush2.bf16.msra.mxu0 0
        %1747 = vmatprep.subr.bf16.mxu0 0
        %1748 = vmatpush2.bf16.msra.mxu0 0
        %1749 = vmatprep.mubr.bf16.mxu0 0
        %1750 = vmatmul.mubr.bf16.gmra.mxu0 %v1702
        %v1751 = vpop.f32.mrf.mxu0
        %v1752 = vadd.f32 0.0, %v1751
        %v1753 = vpop.f32.mrf.mxu0
        %v1754 = vpop.f32.mrf.mxu0
        %v1755 = vadd.f32 0.0, %v1754
        %v1756 = vpop.f32.mrf.mxu0
        %1757 = vmatprep.mubr.bf16.mxu0 0
        %1758 = vmatmul.mubr.bf16.gmra.mxu0 %v1705
        %v1759 = vpop.f32.mrf.mxu0
        %v1760 = vadd.f32 0.0, %v1759
        %v1761 = vpop.f32.mrf.mxu0
        %v1762 = vpop.f32.mrf.mxu0
        %v1763 = vadd.f32 0.0, %v1762
        %v1764 = vpop.f32.mrf.mxu0
        %1765 = vmatprep.mubr.bf16.mxu0 0
        %1766 = vmatmul.mubr.bf16.gmra.mxu0 %v1708
        %v1767 = vpop.f32.mrf.mxu0
        %v1768 = vadd.f32 0.0, %v1767
        %v1769 = vpop.f32.mrf.mxu0
        %v1770 = vpop.f32.mrf.mxu0
        %v1771 = vadd.f32 0.0, %v1770
        %v1772 = vpop.f32.mrf.mxu0
        %1773 = vmatprep.mubr.bf16.mxu0 0
        %1774 = vmatmul.mubr.bf16.gmra.mxu0 %v1711
        %v1775 = vpop.f32.mrf.mxu0
        %v1776 = vadd.f32 0.0, %v1775
        %v1777 = vpop.f32.mrf.mxu0
        %v1778 = vpop.f32.mrf.mxu0
        %v1779 = vadd.f32 0.0, %v1778
        %v1780 = vpop.f32.mrf.mxu0
        %1781 = vdwg.mxu0
        %v1783 = vsel %vm1700, %v1679, 0
        %v1786 = vsel %vm1700, %v1680, 0
        %v1789 = vsel %vm1700, %v1681, 0
        %v1792 = vsel %vm1700, %v1682, 0
        %v1795 = vsel %vm1713, %v1684, 0
        %1797 = vmatprep.subr.bf16.mxu0 0
        %1798 = vmatpush1.bf16.msra.mxu0 0
        %1799 = vmatprep.subr.bf16.mxu0 0
        %1800 = vmatpush1.bf16.msra.mxu0 0
        %1801 = vmatprep.subr.bf16.mxu0 0
        %1802 = vmatpush1.bf16.msra.mxu0 0
        %1803 = vmatprep.subr.bf16.mxu0 0
        %1804 = vmatpush1.bf16.msra.mxu0 0
        %1805 = vmatprep.subr.bf16.mxu0 0
        %1806 = vmatpush1.bf16.msra.mxu0 0
        %1807 = vmatprep.subr.bf16.mxu0 0
        %1808 = vmatpush1.bf16.msra.mxu0 0
        %1809 = vmatprep.subr.bf16.mxu0 0
        %1810 = vmatpush1.bf16.msra.mxu0 0
        %1811 = vmatprep.subr.bf16.mxu0 0
        %1812 = vmatpush1.bf16.msra.mxu0 %v1795
        %1813 = vmatprep.subr.bf16.mxu0 0
        %1814 = vmatpush2.bf16.msra.mxu0 0
        %1815 = vmatprep.subr.bf16.mxu0 0
        %1816 = vmatpush2.bf16.msra.mxu0 0
        %1817 = vmatprep.subr.bf16.mxu0 0
        %1818 = vmatpush2.bf16.msra.mxu0 0
        %1819 = vmatprep.subr.bf16.mxu0 0
        %1820 = vmatpush2.bf16.msra.mxu0 0
        %1821 = vmatprep.subr.bf16.mxu0 0
        %1822 = vmatpush2.bf16.msra.mxu0 0
        %1823 = vmatprep.subr.bf16.mxu0 0
        %1824 = vmatpush2.bf16.msra.mxu0 0
        %1825 = vmatprep.subr.bf16.mxu0 0
        %1826 = vmatpush2.bf16.msra.mxu0 0
        %1827 = vmatprep.subr.bf16.mxu0 0
        %1828 = vmatpush2.bf16.msra.mxu0 0
        %1829 = vmatprep.mubr.bf16.mxu0 0
        %1830 = vmatmul.mubr.bf16.gmra.mxu0 %v1783
        %v1831 = vpop.f32.mrf.mxu0
        %v1832 = vadd.f32 %v1752, %v1831
        %v1833 = vpop.f32.mrf.mxu0
        %v1834 = vpop.f32.mrf.mxu0
        %v1835 = vadd.f32 %v1755, %v1834
        %v1836 = vpop.f32.mrf.mxu0
        %1837 = vmatprep.mubr.bf16.mxu0 0
        %1838 = vmatmul.mubr.bf16.gmra.mxu0 %v1786
        %v1839 = vpop.f32.mrf.mxu0
        %v1840 = vadd.f32 %v1760, %v1839
        %v1841 = vpop.f32.mrf.mxu0
        %v1842 = vpop.f32.mrf.mxu0
        %v1843 = vadd.f32 %v1763, %v1842
        %v1844 = vpop.f32.mrf.mxu0
        %1845 = vmatprep.mubr.bf16.mxu0 0
        %1846 = vmatmul.mubr.bf16.gmra.mxu0 %v1789
        %v1847 = vpop.f32.mrf.mxu0
        %v1848 = vadd.f32 %v1768, %v1847
        %v1849 = vpop.f32.mrf.mxu0
        %v1850 = vpop.f32.mrf.mxu0
        %v1851 = vadd.f32 %v1771, %v1850
        %v1852 = vpop.f32.mrf.mxu0
        %1853 = vmatprep.mubr.bf16.mxu0 0
        %1854 = vmatmul.mubr.bf16.gmra.mxu0 %v1792
        %v1855 = vpop.f32.mrf.mxu0
        %v1856 = vadd.f32 %v1776, %v1855
        %v1857 = vpop.f32.mrf.mxu0
        %v1858 = vpop.f32.mrf.mxu0
        %v1859 = vadd.f32 %v1779, %v1858
        %v1860 = vpop.f32.mrf.mxu0
        %1861 = vdwg.mxu0
        %v1862 = vrot.slane %v1637, 1
        %v1864 = vrot.slane %v1630, 1
        %v1865 = vrot.slane %v1631, 1
        %v1866 = vsel %vm584, %v1864, %v1865
        %v1867 = vrot.slane %v1632, 1
        %v1868 = vsel %vm584, %v1865, %v1867
        %v1869 = vrot.slane %v1633, 1
        %v1870 = vsel %vm584, %v1867, %v1869
        %v1871 = vrot.slane %v1634, 1
        %v1872 = vsel %vm584, %v1869, %v1871
        %v1873 = vrot.slane %v1635, 1
        %v1874 = vsel %vm584, %v1871, %v1873
        %v1875 = vrot.slane %v1636, 1
        %v1876 = vsel %vm584, %v1873, %v1875
        %v1877 = vsel %vm584, %v1875, %v1862
        %v1886 = vsel %vm584, %v1862, %v1864
        %v1887 = vmul.f32 %v1886, %v620
        %v1888 = vmul.f32 %v1866, %v625
        %v1889 = vmul.f32 %v1868, %v630
        %v1890 = vmul.f32 %v1870, %v635
        %v1891 = vmul.f32 %v1872, %v640
        %v1892 = vmul.f32 %v1874, %v645
        %v1893 = vmul.f32 %v1876, %v650
        %v1894 = vmul.f32 %v1877, %v655
        %v1895 = vpack.c.bf16 %v1888, %v1887
        %v1896 = vpack.c.bf16 %v1890, %v1889
        %v1897 = vpack.c.bf16 %v1892, %v1891
        %v1898 = vpack.c.bf16 %v1894, %v1893
        %s1899 = scalar_lea.vmem %s4, 16
        %v1900 = vld [vmem:[%s1899] sm:$0x3f]
        %v1901 = vpack.c.bf16 %v1900, %v1900
        %v1903 = vsel %vm1700, %v1895, 0
        %v1906 = vsel %vm1700, %v1896, 0
        %v1909 = vsel %vm1700, %v1897, 0
        %v1912 = vsel %vm1700, %v1898, 0
        %v1915 = vsel %vm1713, %v1901, 0
        %1917 = vmatprep.subr.bf16.mxu0 0
        %1918 = vmatpush1.bf16.msra.mxu0 0
        %1919 = vmatprep.subr.bf16.mxu0 0
        %1920 = vmatpush1.bf16.msra.mxu0 0
        %1921 = vmatprep.subr.bf16.mxu0 0
        %1922 = vmatpush1.bf16.msra.mxu0 0
        %1923 = vmatprep.subr.bf16.mxu0 0
        %1924 = vmatpush1.bf16.msra.mxu0 0
        %1925 = vmatprep.subr.bf16.mxu0 0
        %1926 = vmatpush1.bf16.msra.mxu0 0
        %1927 = vmatprep.subr.bf16.mxu0 0
        %1928 = vmatpush1.bf16.msra.mxu0 0
        %1929 = vmatprep.subr.bf16.mxu0 0
        %1930 = vmatpush1.bf16.msra.mxu0 0
        %1931 = vmatprep.subr.bf16.mxu0 0
        %1932 = vmatpush1.bf16.msra.mxu0 %v1915
        %1933 = vmatprep.subr.bf16.mxu0 0
        %1934 = vmatpush2.bf16.msra.mxu0 0
        %1935 = vmatprep.subr.bf16.mxu0 0
        %1936 = vmatpush2.bf16.msra.mxu0 0
        %1937 = vmatprep.subr.bf16.mxu0 0
        %1938 = vmatpush2.bf16.msra.mxu0 0
        %1939 = vmatprep.subr.bf16.mxu0 0
        %1940 = vmatpush2.bf16.msra.mxu0 0
        %1941 = vmatprep.subr.bf16.mxu0 0
        %1942 = vmatpush2.bf16.msra.mxu0 0
        %1943 = vmatprep.subr.bf16.mxu0 0
        %1944 = vmatpush2.bf16.msra.mxu0 0
        %1945 = vmatprep.subr.bf16.mxu0 0
        %1946 = vmatpush2.bf16.msra.mxu0 0
        %1947 = vmatprep.subr.bf16.mxu0 0
        %1948 = vmatpush2.bf16.msra.mxu0 0
        %1949 = vmatprep.mubr.bf16.mxu0 0
        %1950 = vmatmul.mubr.bf16.gmra.mxu0 %v1903
        %v1951 = vpop.f32.mrf.mxu0
        %v1952 = vadd.f32 0.0, %v1951
        %v1953 = vpop.f32.mrf.mxu0
        %v1954 = vpop.f32.mrf.mxu0
        %v1955 = vadd.f32 0.0, %v1954
        %v1956 = vpop.f32.mrf.mxu0
        %1957 = vmatprep.mubr.bf16.mxu0 0
        %1958 = vmatmul.mubr.bf16.gmra.mxu0 %v1906
        %v1959 = vpop.f32.mrf.mxu0
        %v1960 = vadd.f32 0.0, %v1959
        %v1961 = vpop.f32.mrf.mxu0
        %v1962 = vpop.f32.mrf.mxu0
        %v1963 = vadd.f32 0.0, %v1962
        %v1964 = vpop.f32.mrf.mxu0
        %1965 = vmatprep.mubr.bf16.mxu0 0
        %1966 = vmatmul.mubr.bf16.gmra.mxu0 %v1909
        %v1967 = vpop.f32.mrf.mxu0
        %v1968 = vadd.f32 0.0, %v1967
        %v1969 = vpop.f32.mrf.mxu0
        %v1970 = vpop.f32.mrf.mxu0
        %v1971 = vadd.f32 0.0, %v1970
        %v1972 = vpop.f32.mrf.mxu0
        %1973 = vmatprep.mubr.bf16.mxu0 0
        %1974 = vmatmul.mubr.bf16.gmra.mxu0 %v1912
        %v1975 = vpop.f32.mrf.mxu0
        %v1976 = vadd.f32 0.0, %v1975
        %v1977 = vpop.f32.mrf.mxu0
        %v1978 = vpop.f32.mrf.mxu0
        %v1979 = vadd.f32 0.0, %v1978
        %v1980 = vpop.f32.mrf.mxu0
        %1981 = vdwg.mxu0
        %v1982 = vadd.f32 %v1832, %v1952
        %v1983 = vadd.f32 %v1835, %v1955
        %v1984 = vadd.f32 %v1840, %v1960
        %v1985 = vadd.f32 %v1843, %v1963
        %v1986 = vadd.f32 %v1848, %v1968
        %v1987 = vadd.f32 %v1851, %v1971
        %v1988 = vadd.f32 %v1856, %v1976
        %v1989 = vadd.f32 %v1859, %v1979
        %v1990 = vmul.f32 %v1670, %v772
        %v1991 = vmul.f32 %v1653, %v777
        %v1992 = vmul.f32 %v1655, %v782
        %v1993 = vmul.f32 %v1657, %v787
        %v1994 = vmul.f32 %v1659, %v792
        %v1995 = vmul.f32 %v1661, %v797
        %v1996 = vmul.f32 %v1662, %v802
        %v1997 = vmul.f32 %v1642, %v807
        %v1998 = vpack.c.bf16 %v1991, %v1990
        %v1999 = vpack.c.bf16 %v1993, %v1992
        %v2000 = vpack.c.bf16 %v1995, %v1994
        %v2001 = vpack.c.bf16 %v1997, %v1996
        %s2002 = scalar_lea.vmem %s4, 24
        %v2003 = vld [vmem:[%s2002] sm:$0x3f]
        %v2004 = vpack.c.bf16 %v2003, %v2003
        %v2006 = vsel %vm1700, %v1998, 0
        %v2009 = vsel %vm1700, %v1999, 0
        %v2012 = vsel %vm1700, %v2000, 0
        %v2015 = vsel %vm1700, %v2001, 0
        %v2018 = vsel %vm1713, %v2004, 0
        %2020 = vmatprep.subr.bf16.mxu0 0
        %2021 = vmatpush1.bf16.msra.mxu0 0
        %2022 = vmatprep.subr.bf16.mxu0 0
        %2023 = vmatpush1.bf16.msra.mxu0 0
        %2024 = vmatprep.subr.bf16.mxu0 0
        %2025 = vmatpush1.bf16.msra.mxu0 0
        %2026 = vmatprep.subr.bf16.mxu0 0
        %2027 = vmatpush1.bf16.msra.mxu0 0
        %2028 = vmatprep.subr.bf16.mxu0 0
        %2029 = vmatpush1.bf16.msra.mxu0 0
        %2030 = vmatprep.subr.bf16.mxu0 0
        %2031 = vmatpush1.bf16.msra.mxu0 0
        %2032 = vmatprep.subr.bf16.mxu0 0
        %2033 = vmatpush1.bf16.msra.mxu0 0
        %2034 = vmatprep.subr.bf16.mxu0 0
        %2035 = vmatpush1.bf16.msra.mxu0 %v2018
        %2036 = vmatprep.subr.bf16.mxu0 0
        %2037 = vmatpush2.bf16.msra.mxu0 0
        %2038 = vmatprep.subr.bf16.mxu0 0
        %2039 = vmatpush2.bf16.msra.mxu0 0
        %2040 = vmatprep.subr.bf16.mxu0 0
        %2041 = vmatpush2.bf16.msra.mxu0 0
        %2042 = vmatprep.subr.bf16.mxu0 0
        %2043 = vmatpush2.bf16.msra.mxu0 0
        %2044 = vmatprep.subr.bf16.mxu0 0
        %2045 = vmatpush2.bf16.msra.mxu0 0
        %2046 = vmatprep.subr.bf16.mxu0 0
        %2047 = vmatpush2.bf16.msra.mxu0 0
        %2048 = vmatprep.subr.bf16.mxu0 0
        %2049 = vmatpush2.bf16.msra.mxu0 0
        %2050 = vmatprep.subr.bf16.mxu0 0
        %2051 = vmatpush2.bf16.msra.mxu0 0
        %2052 = vmatprep.mubr.bf16.mxu0 0
        %2053 = vmatmul.mubr.bf16.gmra.mxu0 %v2006
        %v2054 = vpop.f32.mrf.mxu0
        %v2055 = vadd.f32 0.0, %v2054
        %v2056 = vpop.f32.mrf.mxu0
        %v2057 = vpop.f32.mrf.mxu0
        %v2058 = vadd.f32 0.0, %v2057
        %v2059 = vpop.f32.mrf.mxu0
        %2060 = vmatprep.mubr.bf16.mxu0 0
        %2061 = vmatmul.mubr.bf16.gmra.mxu0 %v2009
        %v2062 = vpop.f32.mrf.mxu0
        %v2063 = vadd.f32 0.0, %v2062
        %v2064 = vpop.f32.mrf.mxu0
        %v2065 = vpop.f32.mrf.mxu0
        %v2066 = vadd.f32 0.0, %v2065
        %v2067 = vpop.f32.mrf.mxu0
        %2068 = vmatprep.mubr.bf16.mxu0 0
        %2069 = vmatmul.mubr.bf16.gmra.mxu0 %v2012
        %v2070 = vpop.f32.mrf.mxu0
        %v2071 = vadd.f32 0.0, %v2070
        %v2072 = vpop.f32.mrf.mxu0
        %v2073 = vpop.f32.mrf.mxu0
        %v2074 = vadd.f32 0.0, %v2073
        %v2075 = vpop.f32.mrf.mxu0
        %2076 = vmatprep.mubr.bf16.mxu0 0
        %2077 = vmatmul.mubr.bf16.gmra.mxu0 %v2015
        %v2078 = vpop.f32.mrf.mxu0
        %v2079 = vadd.f32 0.0, %v2078
        %v2080 = vpop.f32.mrf.mxu0
        %v2081 = vpop.f32.mrf.mxu0
        %v2082 = vadd.f32 0.0, %v2081
        %v2083 = vpop.f32.mrf.mxu0
        %2084 = vdwg.mxu0
        %v2085 = vadd.f32 %v1982, %v2055
        %v2086 = vadd.f32 %v1983, %v2058
        %v2087 = vadd.f32 %v1984, %v2063
        %v2088 = vadd.f32 %v1985, %v2066
        %v2089 = vadd.f32 %v1986, %v2071
        %v2090 = vadd.f32 %v1987, %v2074
        %v2091 = vadd.f32 %v1988, %v2079
        %v2092 = vadd.f32 %v1989, %v2082
        %v2093 = vpack.c.bf16 %v1631, %v1630
        %v2094 = vpack.c.bf16 %v1633, %v1632
        %v2095 = vpack.c.bf16 %v1635, %v1634
        %v2096 = vpack.c.bf16 %v1637, %v1636
        %s2097 = scalar_lea.vmem %s4, 32
        %v2098 = vld [vmem:[%s2097] sm:$0x3f]
        %v2099 = vpack.c.bf16 %v2098, %v2098
        %v2101 = vsel %vm1700, %v2093, 0
        %v2104 = vsel %vm1700, %v2094, 0
        %v2107 = vsel %vm1700, %v2095, 0
        %v2110 = vsel %vm1700, %v2096, 0
        %v2113 = vsel %vm1713, %v2099, 0
        %2115 = vmatprep.subr.bf16.mxu0 0
        %2116 = vmatpush1.bf16.msra.mxu0 0
        %2117 = vmatprep.subr.bf16.mxu0 0
        %2118 = vmatpush1.bf16.msra.mxu0 0
        %2119 = vmatprep.subr.bf16.mxu0 0
        %2120 = vmatpush1.bf16.msra.mxu0 0
        %2121 = vmatprep.subr.bf16.mxu0 0
        %2122 = vmatpush1.bf16.msra.mxu0 0
        %2123 = vmatprep.subr.bf16.mxu0 0
        %2124 = vmatpush1.bf16.msra.mxu0 0
        %2125 = vmatprep.subr.bf16.mxu0 0
        %2126 = vmatpush1.bf16.msra.mxu0 0
        %2127 = vmatprep.subr.bf16.mxu0 0
        %2128 = vmatpush1.bf16.msra.mxu0 0
        %2129 = vmatprep.subr.bf16.mxu0 0
        %2130 = vmatpush1.bf16.msra.mxu0 %v2113
        %2131 = vmatprep.subr.bf16.mxu0 0
        %2132 = vmatpush2.bf16.msra.mxu0 0
        %2133 = vmatprep.subr.bf16.mxu0 0
        %2134 = vmatpush2.bf16.msra.mxu0 0
        %2135 = vmatprep.subr.bf16.mxu0 0
        %2136 = vmatpush2.bf16.msra.mxu0 0
        %2137 = vmatprep.subr.bf16.mxu0 0
        %2138 = vmatpush2.bf16.msra.mxu0 0
        %2139 = vmatprep.subr.bf16.mxu0 0
        %2140 = vmatpush2.bf16.msra.mxu0 0
        %2141 = vmatprep.subr.bf16.mxu0 0
        %2142 = vmatpush2.bf16.msra.mxu0 0
        %2143 = vmatprep.subr.bf16.mxu0 0
        %2144 = vmatpush2.bf16.msra.mxu0 0
        %2145 = vmatprep.subr.bf16.mxu0 0
        %2146 = vmatpush2.bf16.msra.mxu0 0
        %2147 = vmatprep.mubr.bf16.mxu0 0
        %2148 = vmatmul.mubr.bf16.gmra.mxu0 %v2101
        %v2149 = vpop.f32.mrf.mxu0
        %v2150 = vadd.f32 0.0, %v2149
        %v2151 = vpop.f32.mrf.mxu0
        %v2152 = vpop.f32.mrf.mxu0
        %v2153 = vadd.f32 0.0, %v2152
        %v2154 = vpop.f32.mrf.mxu0
        %2155 = vmatprep.mubr.bf16.mxu0 0
        %2156 = vmatmul.mubr.bf16.gmra.mxu0 %v2104
        %v2157 = vpop.f32.mrf.mxu0
        %v2158 = vadd.f32 0.0, %v2157
        %v2159 = vpop.f32.mrf.mxu0
        %v2160 = vpop.f32.mrf.mxu0
        %v2161 = vadd.f32 0.0, %v2160
        %v2162 = vpop.f32.mrf.mxu0
        %2163 = vmatprep.mubr.bf16.mxu0 0
        %2164 = vmatmul.mubr.bf16.gmra.mxu0 %v2107
        %v2165 = vpop.f32.mrf.mxu0
        %v2166 = vadd.f32 0.0, %v2165
        %v2167 = vpop.f32.mrf.mxu0
        %v2168 = vpop.f32.mrf.mxu0
        %v2169 = vadd.f32 0.0, %v2168
        %v2170 = vpop.f32.mrf.mxu0
        %2171 = vmatprep.mubr.bf16.mxu0 0
        %2172 = vmatmul.mubr.bf16.gmra.mxu0 %v2110
        %v2173 = vpop.f32.mrf.mxu0
        %v2174 = vadd.f32 0.0, %v2173
        %v2175 = vpop.f32.mrf.mxu0
        %v2176 = vpop.f32.mrf.mxu0
        %v2177 = vadd.f32 0.0, %v2176
        %v2178 = vpop.f32.mrf.mxu0
        %2179 = vdwg.mxu0
        %v2180 = vadd.f32 %v2085, %v2150
        %v2181 = vadd.f32 %v2086, %v2153
        %v2182 = vadd.f32 %v2087, %v2158
        %v2183 = vadd.f32 %v2088, %v2161
        %v2184 = vadd.f32 %v2089, %v2166
        %v2185 = vadd.f32 %v2090, %v2169
        %v2186 = vadd.f32 %v2091, %v2174
        %v2187 = vadd.f32 %v2092, %v2177
        %v2188 = vmul.f32 %v1866, %v1019
        %v2189 = vmul.f32 %v1868, %v1024
        %v2190 = vmul.f32 %v1870, %v1029
        %v2191 = vmul.f32 %v1872, %v1034
        %v2192 = vmul.f32 %v1874, %v1039
        %v2193 = vmul.f32 %v1876, %v1044
        %v2194 = vmul.f32 %v1877, %v1049
        %v2195 = vmul.f32 %v1886, %v1054
        %v2196 = vpack.c.bf16 %v2189, %v2188
        %v2197 = vpack.c.bf16 %v2191, %v2190
        %v2198 = vpack.c.bf16 %v2193, %v2192
        %v2199 = vpack.c.bf16 %v2195, %v2194
        %s2200 = scalar_lea.vmem %s4, 40
        %v2201 = vld [vmem:[%s2200] sm:$0x3f]
        %v2202 = vpack.c.bf16 %v2201, %v2201
        %v2204 = vsel %vm1700, %v2196, 0
        %v2207 = vsel %vm1700, %v2197, 0
        %v2210 = vsel %vm1700, %v2198, 0
        %v2213 = vsel %vm1700, %v2199, 0
        %v2216 = vsel %vm1713, %v2202, 0
        %2218 = vmatprep.subr.bf16.mxu0 0
        %2219 = vmatpush1.bf16.msra.mxu0 0
        %2220 = vmatprep.subr.bf16.mxu0 0
        %2221 = vmatpush1.bf16.msra.mxu0 0
        %2222 = vmatprep.subr.bf16.mxu0 0
        %2223 = vmatpush1.bf16.msra.mxu0 0
        %2224 = vmatprep.subr.bf16.mxu0 0
        %2225 = vmatpush1.bf16.msra.mxu0 0
        %2226 = vmatprep.subr.bf16.mxu0 0
        %2227 = vmatpush1.bf16.msra.mxu0 0
        %2228 = vmatprep.subr.bf16.mxu0 0
        %2229 = vmatpush1.bf16.msra.mxu0 0
        %2230 = vmatprep.subr.bf16.mxu0 0
        %2231 = vmatpush1.bf16.msra.mxu0 0
        %2232 = vmatprep.subr.bf16.mxu0 0
        %2233 = vmatpush1.bf16.msra.mxu0 %v2216
        %2234 = vmatprep.subr.bf16.mxu0 0
        %2235 = vmatpush2.bf16.msra.mxu0 0
        %2236 = vmatprep.subr.bf16.mxu0 0
        %2237 = vmatpush2.bf16.msra.mxu0 0
        %2238 = vmatprep.subr.bf16.mxu0 0
        %2239 = vmatpush2.bf16.msra.mxu0 0
        %2240 = vmatprep.subr.bf16.mxu0 0
        %2241 = vmatpush2.bf16.msra.mxu0 0
        %2242 = vmatprep.subr.bf16.mxu0 0
        %2243 = vmatpush2.bf16.msra.mxu0 0
        %2244 = vmatprep.subr.bf16.mxu0 0
        %2245 = vmatpush2.bf16.msra.mxu0 0
        %2246 = vmatprep.subr.bf16.mxu0 0
        %2247 = vmatpush2.bf16.msra.mxu0 0
        %2248 = vmatprep.subr.bf16.mxu0 0
        %2249 = vmatpush2.bf16.msra.mxu0 0
        %2250 = vmatprep.mubr.bf16.mxu0 0
        %2251 = vmatmul.mubr.bf16.gmra.mxu0 %v2204
        %v2252 = vpop.f32.mrf.mxu0
        %v2253 = vadd.f32 0.0, %v2252
        %v2254 = vpop.f32.mrf.mxu0
        %v2255 = vpop.f32.mrf.mxu0
        %v2256 = vadd.f32 0.0, %v2255
        %v2257 = vpop.f32.mrf.mxu0
        %2258 = vmatprep.mubr.bf16.mxu0 0
        %2259 = vmatmul.mubr.bf16.gmra.mxu0 %v2207
        %v2260 = vpop.f32.mrf.mxu0
        %v2261 = vadd.f32 0.0, %v2260
        %v2262 = vpop.f32.mrf.mxu0
        %v2263 = vpop.f32.mrf.mxu0
        %v2264 = vadd.f32 0.0, %v2263
        %v2265 = vpop.f32.mrf.mxu0
        %2266 = vmatprep.mubr.bf16.mxu0 0
        %2267 = vmatmul.mubr.bf16.gmra.mxu0 %v2210
        %v2268 = vpop.f32.mrf.mxu0
        %v2269 = vadd.f32 0.0, %v2268
        %v2270 = vpop.f32.mrf.mxu0
        %v2271 = vpop.f32.mrf.mxu0
        %v2272 = vadd.f32 0.0, %v2271
        %v2273 = vpop.f32.mrf.mxu0
        %2274 = vmatprep.mubr.bf16.mxu0 0
        %2275 = vmatmul.mubr.bf16.gmra.mxu0 %v2213
        %v2276 = vpop.f32.mrf.mxu0
        %v2277 = vadd.f32 0.0, %v2276
        %v2278 = vpop.f32.mrf.mxu0
        %v2279 = vpop.f32.mrf.mxu0
        %v2280 = vadd.f32 0.0, %v2279
        %v2281 = vpop.f32.mrf.mxu0
        %2282 = vdwg.mxu0
        %v2283 = vadd.f32 %v2180, %v2253
        %v2284 = vadd.f32 %v2181, %v2256
        %v2285 = vadd.f32 %v2182, %v2261
        %v2286 = vadd.f32 %v2183, %v2264
        %v2287 = vadd.f32 %v2184, %v2269
        %v2288 = vadd.f32 %v2185, %v2272
        %v2289 = vadd.f32 %v2186, %v2277
        %v2290 = vadd.f32 %v2187, %v2280
        %v2291 = vmul.f32 %v1653, %v1171
        %v2292 = vmul.f32 %v1655, %v1176
        %v2293 = vmul.f32 %v1657, %v1181
        %v2294 = vmul.f32 %v1659, %v1186
        %v2295 = vmul.f32 %v1661, %v1191
        %v2296 = vmul.f32 %v1662, %v1196
        %v2297 = vmul.f32 %v1642, %v1201
        %v2298 = vmul.f32 %v1670, %v1206
        %v2299 = vpack.c.bf16 %v2292, %v2291
        %v2300 = vpack.c.bf16 %v2294, %v2293
        %v2301 = vpack.c.bf16 %v2296, %v2295
        %v2302 = vpack.c.bf16 %v2298, %v2297
        %s2303 = scalar_lea.vmem %s4, 48
        %v2304 = vld [vmem:[%s2303] sm:$0x3f]
        %v2305 = vpack.c.bf16 %v2304, %v2304
        %v2307 = vsel %vm1700, %v2299, 0
        %v2310 = vsel %vm1700, %v2300, 0
        %v2313 = vsel %vm1700, %v2301, 0
        %v2316 = vsel %vm1700, %v2302, 0
        %v2319 = vsel %vm1713, %v2305, 0
        %2321 = vmatprep.subr.bf16.mxu0 0
        %2322 = vmatpush1.bf16.msra.mxu0 0
        %2323 = vmatprep.subr.bf16.mxu0 0
        %2324 = vmatpush1.bf16.msra.mxu0 0
        %2325 = vmatprep.subr.bf16.mxu0 0
        %2326 = vmatpush1.bf16.msra.mxu0 0
        %2327 = vmatprep.subr.bf16.mxu0 0
        %2328 = vmatpush1.bf16.msra.mxu0 0
        %2329 = vmatprep.subr.bf16.mxu0 0
        %2330 = vmatpush1.bf16.msra.mxu0 0
        %2331 = vmatprep.subr.bf16.mxu0 0
        %2332 = vmatpush1.bf16.msra.mxu0 0
        %2333 = vmatprep.subr.bf16.mxu0 0
        %2334 = vmatpush1.bf16.msra.mxu0 0
        %2335 = vmatprep.subr.bf16.mxu0 0
        %2336 = vmatpush1.bf16.msra.mxu0 %v2319
        %2337 = vmatprep.subr.bf16.mxu0 0
        %2338 = vmatpush2.bf16.msra.mxu0 0
        %2339 = vmatprep.subr.bf16.mxu0 0
        %2340 = vmatpush2.bf16.msra.mxu0 0
        %2341 = vmatprep.subr.bf16.mxu0 0
        %2342 = vmatpush2.bf16.msra.mxu0 0
        %2343 = vmatprep.subr.bf16.mxu0 0
        %2344 = vmatpush2.bf16.msra.mxu0 0
        %2345 = vmatprep.subr.bf16.mxu0 0
        %2346 = vmatpush2.bf16.msra.mxu0 0
        %2347 = vmatprep.subr.bf16.mxu0 0
        %2348 = vmatpush2.bf16.msra.mxu0 0
        %2349 = vmatprep.subr.bf16.mxu0 0
        %2350 = vmatpush2.bf16.msra.mxu0 0
        %2351 = vmatprep.subr.bf16.mxu0 0
        %2352 = vmatpush2.bf16.msra.mxu0 0
        %2353 = vmatprep.mubr.bf16.mxu0 0
        %2354 = vmatmul.mubr.bf16.gmra.mxu0 %v2307
        %v2355 = vpop.f32.mrf.mxu0
        %v2356 = vadd.f32 0.0, %v2355
        %v2357 = vpop.f32.mrf.mxu0
        %v2358 = vpop.f32.mrf.mxu0
        %v2359 = vadd.f32 0.0, %v2358
        %v2360 = vpop.f32.mrf.mxu0
        %2361 = vmatprep.mubr.bf16.mxu0 0
        %2362 = vmatmul.mubr.bf16.gmra.mxu0 %v2310
        %v2363 = vpop.f32.mrf.mxu0
        %v2364 = vadd.f32 0.0, %v2363
        %v2365 = vpop.f32.mrf.mxu0
        %v2366 = vpop.f32.mrf.mxu0
        %v2367 = vadd.f32 0.0, %v2366
        %v2368 = vpop.f32.mrf.mxu0
        %2369 = vmatprep.mubr.bf16.mxu0 0
        %2370 = vmatmul.mubr.bf16.gmra.mxu0 %v2313
        %v2371 = vpop.f32.mrf.mxu0
        %v2372 = vadd.f32 0.0, %v2371
        %v2373 = vpop.f32.mrf.mxu0
        %v2374 = vpop.f32.mrf.mxu0
        %v2375 = vadd.f32 0.0, %v2374
        %v2376 = vpop.f32.mrf.mxu0
        %2377 = vmatprep.mubr.bf16.mxu0 0
        %2378 = vmatmul.mubr.bf16.gmra.mxu0 %v2316
        %v2379 = vpop.f32.mrf.mxu0
        %v2380 = vadd.f32 0.0, %v2379
        %v2381 = vpop.f32.mrf.mxu0
        %v2382 = vpop.f32.mrf.mxu0
        %v2383 = vadd.f32 0.0, %v2382
        %v2384 = vpop.f32.mrf.mxu0
        %2385 = vdwg.mxu0
        %v2386 = vadd.f32 %v2283, %v2356
        %v2387 = vadd.f32 %v2284, %v2359
        %v2388 = vadd.f32 %v2285, %v2364
        %v2389 = vadd.f32 %v2286, %v2367
        %v2390 = vadd.f32 %v2287, %v2372
        %v2391 = vadd.f32 %v2288, %v2375
        %v2392 = vadd.f32 %v2289, %v2380
        %v2393 = vadd.f32 %v2290, %v2383
        %v2394 = vmul.f32 %v1631, %v1323
        %v2395 = vmul.f32 %v1632, %v1328
        %v2396 = vmul.f32 %v1633, %v1333
        %v2397 = vmul.f32 %v1634, %v1338
        %v2398 = vmul.f32 %v1635, %v1343
        %v2399 = vmul.f32 %v1636, %v1348
        %v2400 = vmul.f32 %v1637, %v1353
        %v2401 = vmul.f32 %v1630, %v1358
        %v2402 = vpack.c.bf16 %v2395, %v2394
        %v2403 = vpack.c.bf16 %v2397, %v2396
        %v2404 = vpack.c.bf16 %v2399, %v2398
        %v2405 = vpack.c.bf16 %v2401, %v2400
        %s2406 = scalar_lea.vmem %s4, 56
        %v2407 = vld [vmem:[%s2406] sm:$0x3f]
        %v2408 = vpack.c.bf16 %v2407, %v2407
        %v2410 = vsel %vm1700, %v2402, 0
        %v2413 = vsel %vm1700, %v2403, 0
        %v2416 = vsel %vm1700, %v2404, 0
        %v2419 = vsel %vm1700, %v2405, 0
        %v2422 = vsel %vm1713, %v2408, 0
        %2424 = vmatprep.subr.bf16.mxu0 0
        %2425 = vmatpush1.bf16.msra.mxu0 0
        %2426 = vmatprep.subr.bf16.mxu0 0
        %2427 = vmatpush1.bf16.msra.mxu0 0
        %2428 = vmatprep.subr.bf16.mxu0 0
        %2429 = vmatpush1.bf16.msra.mxu0 0
        %2430 = vmatprep.subr.bf16.mxu0 0
        %2431 = vmatpush1.bf16.msra.mxu0 0
        %2432 = vmatprep.subr.bf16.mxu0 0
        %2433 = vmatpush1.bf16.msra.mxu0 0
        %2434 = vmatprep.subr.bf16.mxu0 0
        %2435 = vmatpush1.bf16.msra.mxu0 0
        %2436 = vmatprep.subr.bf16.mxu0 0
        %2437 = vmatpush1.bf16.msra.mxu0 0
        %2438 = vmatprep.subr.bf16.mxu0 0
        %2439 = vmatpush1.bf16.msra.mxu0 %v2422
        %2440 = vmatprep.subr.bf16.mxu0 0
        %2441 = vmatpush2.bf16.msra.mxu0 0
        %2442 = vmatprep.subr.bf16.mxu0 0
        %2443 = vmatpush2.bf16.msra.mxu0 0
        %2444 = vmatprep.subr.bf16.mxu0 0
        %2445 = vmatpush2.bf16.msra.mxu0 0
        %2446 = vmatprep.subr.bf16.mxu0 0
        %2447 = vmatpush2.bf16.msra.mxu0 0
        %2448 = vmatprep.subr.bf16.mxu0 0
        %2449 = vmatpush2.bf16.msra.mxu0 0
        %2450 = vmatprep.subr.bf16.mxu0 0
        %2451 = vmatpush2.bf16.msra.mxu0 0
        %2452 = vmatprep.subr.bf16.mxu0 0
        %2453 = vmatpush2.bf16.msra.mxu0 0
        %2454 = vmatprep.subr.bf16.mxu0 0
        %2455 = vmatpush2.bf16.msra.mxu0 0
        %2456 = vmatprep.mubr.bf16.mxu0 0
        %2457 = vmatmul.mubr.bf16.gmra.mxu0 %v2410
        %v2458 = vpop.f32.mrf.mxu0
        %v2459 = vadd.f32 0.0, %v2458
        %v2460 = vpop.f32.mrf.mxu0
        %v2461 = vpop.f32.mrf.mxu0
        %v2462 = vadd.f32 0.0, %v2461
        %v2463 = vpop.f32.mrf.mxu0
        %2464 = vmatprep.mubr.bf16.mxu0 0
        %2465 = vmatmul.mubr.bf16.gmra.mxu0 %v2413
        %v2466 = vpop.f32.mrf.mxu0
        %v2467 = vadd.f32 0.0, %v2466
        %v2468 = vpop.f32.mrf.mxu0
        %v2469 = vpop.f32.mrf.mxu0
        %v2470 = vadd.f32 0.0, %v2469
        %v2471 = vpop.f32.mrf.mxu0
        %2472 = vmatprep.mubr.bf16.mxu0 0
        %2473 = vmatmul.mubr.bf16.gmra.mxu0 %v2416
        %v2474 = vpop.f32.mrf.mxu0
        %v2475 = vadd.f32 0.0, %v2474
        %v2476 = vpop.f32.mrf.mxu0
        %v2477 = vpop.f32.mrf.mxu0
        %v2478 = vadd.f32 0.0, %v2477
        %v2479 = vpop.f32.mrf.mxu0
        %2480 = vmatprep.mubr.bf16.mxu0 0
        %2481 = vmatmul.mubr.bf16.gmra.mxu0 %v2419
        %v2482 = vpop.f32.mrf.mxu0
        %v2483 = vadd.f32 0.0, %v2482
        %v2484 = vpop.f32.mrf.mxu0
        %v2485 = vpop.f32.mrf.mxu0
        %v2486 = vadd.f32 0.0, %v2485
        %v2487 = vpop.f32.mrf.mxu0
        %2488 = vdwg.mxu0
        %v2489 = vadd.f32 %v2386, %v2459
        %v2490 = vadd.f32 %v2387, %v2462
        %v2491 = vadd.f32 %v2388, %v2467
        %v2492 = vadd.f32 %v2389, %v2470
        %v2493 = vadd.f32 %v2390, %v2475
        %v2494 = vadd.f32 %v2391, %v2478
        %v2495 = vadd.f32 %v2392, %v2483
        %v2496 = vadd.f32 %v2393, %v2486
        %v2497 = vmul.f32 %v1868, %v1475
        %v2498 = vmul.f32 %v1870, %v1480
        %v2499 = vmul.f32 %v1872, %v1485
        %v2500 = vmul.f32 %v1874, %v1490
        %v2501 = vmul.f32 %v1876, %v1495
        %v2502 = vmul.f32 %v1877, %v1500
        %v2503 = vmul.f32 %v1886, %v1505
        %v2504 = vmul.f32 %v1866, %v1510
        %v2505 = vpack.c.bf16 %v2498, %v2497
        %v2506 = vpack.c.bf16 %v2500, %v2499
        %v2507 = vpack.c.bf16 %v2502, %v2501
        %v2508 = vpack.c.bf16 %v2504, %v2503
        %s2509 = scalar_lea.vmem %s4, 64
        %v2510 = vld [vmem:[%s2509] sm:$0x3f]
        %v2511 = vpack.c.bf16 %v2510, %v2510
        %v2513 = vsel %vm1700, %v2505, 0
        %v2516 = vsel %vm1700, %v2506, 0
        %v2519 = vsel %vm1700, %v2507, 0
        %v2522 = vsel %vm1700, %v2508, 0
        %v2525 = vsel %vm1713, %v2511, 0
        %2527 = vmatprep.subr.bf16.mxu0 0
        %2528 = vmatpush1.bf16.msra.mxu0 0
        %2529 = vmatprep.subr.bf16.mxu0 0
        %2530 = vmatpush1.bf16.msra.mxu0 0
        %2531 = vmatprep.subr.bf16.mxu0 0
        %2532 = vmatpush1.bf16.msra.mxu0 0
        %2533 = vmatprep.subr.bf16.mxu0 0
        %2534 = vmatpush1.bf16.msra.mxu0 0
        %2535 = vmatprep.subr.bf16.mxu0 0
        %2536 = vmatpush1.bf16.msra.mxu0 0
        %2537 = vmatprep.subr.bf16.mxu0 0
        %2538 = vmatpush1.bf16.msra.mxu0 0
        %2539 = vmatprep.subr.bf16.mxu0 0
        %2540 = vmatpush1.bf16.msra.mxu0 0
        %2541 = vmatprep.subr.bf16.mxu0 0
        %2542 = vmatpush1.bf16.msra.mxu0 %v2525
        %2543 = vmatprep.subr.bf16.mxu0 0
        %2544 = vmatpush2.bf16.msra.mxu0 0
        %2545 = vmatprep.subr.bf16.mxu0 0
        %2546 = vmatpush2.bf16.msra.mxu0 0
        %2547 = vmatprep.subr.bf16.mxu0 0
        %2548 = vmatpush2.bf16.msra.mxu0 0
        %2549 = vmatprep.subr.bf16.mxu0 0
        %2550 = vmatpush2.bf16.msra.mxu0 0
        %2551 = vmatprep.subr.bf16.mxu0 0
        %2552 = vmatpush2.bf16.msra.mxu0 0
        %2553 = vmatprep.subr.bf16.mxu0 0
        %2554 = vmatpush2.bf16.msra.mxu0 0
        %2555 = vmatprep.subr.bf16.mxu0 0
        %2556 = vmatpush2.bf16.msra.mxu0 0
        %2557 = vmatprep.subr.bf16.mxu0 0
        %2558 = vmatpush2.bf16.msra.mxu0 0
        %2559 = vmatprep.mubr.bf16.mxu0 0
        %2560 = vmatmul.mubr.bf16.gmra.mxu0 %v2513
        %v2561 = vpop.f32.mrf.mxu0
        %v2562 = vadd.f32 0.0, %v2561
        %v2563 = vpop.f32.mrf.mxu0
        %v2564 = vpop.f32.mrf.mxu0
        %v2565 = vadd.f32 0.0, %v2564
        %v2566 = vpop.f32.mrf.mxu0
        %2567 = vmatprep.mubr.bf16.mxu0 0
        %2568 = vmatmul.mubr.bf16.gmra.mxu0 %v2516
        %v2569 = vpop.f32.mrf.mxu0
        %v2570 = vadd.f32 0.0, %v2569
        %v2571 = vpop.f32.mrf.mxu0
        %v2572 = vpop.f32.mrf.mxu0
        %v2573 = vadd.f32 0.0, %v2572
        %v2574 = vpop.f32.mrf.mxu0
        %2575 = vmatprep.mubr.bf16.mxu0 0
        %2576 = vmatmul.mubr.bf16.gmra.mxu0 %v2519
        %v2577 = vpop.f32.mrf.mxu0
        %v2578 = vadd.f32 0.0, %v2577
        %v2579 = vpop.f32.mrf.mxu0
        %v2580 = vpop.f32.mrf.mxu0
        %v2581 = vadd.f32 0.0, %v2580
        %v2582 = vpop.f32.mrf.mxu0
        %2583 = vmatprep.mubr.bf16.mxu0 0
        %2584 = vmatmul.mubr.bf16.gmra.mxu0 %v2522
        %v2585 = vpop.f32.mrf.mxu0
        %v2586 = vadd.f32 0.0, %v2585
        %v2587 = vpop.f32.mrf.mxu0
        %v2588 = vpop.f32.mrf.mxu0
        %v2589 = vadd.f32 0.0, %v2588
        %v2590 = vpop.f32.mrf.mxu0
        %2591 = vdwg.mxu0
        %v2592 = vadd.f32 %v2489, %v2562
        %v2593 = vadd.f32 %v2490, %v2565
        %v2594 = vadd.f32 %v2491, %v2570
        %v2595 = vadd.f32 %v2492, %v2573
        %v2596 = vadd.f32 %v2493, %v2578
        %v2597 = vadd.f32 %v2494, %v2581
        %v2598 = vadd.f32 %v2495, %v2586
        %v2599 = vadd.f32 %v2496, %v2589
        %v2600 = vld [vmem:[%s5] sm:$0x1]
        %v2602 = vlaneseq
        %v2603 = vshrl.u32 %v2602, 7
        %v2604 = vsub.s32 0, %v2603
        %v2605 = vrot.slane %v2600, %v2604
        %v2607 = vadd.f32 %v2592, %v2605
        %v2608 = vadd.f32 %v2593, %v2605
        %v2609 = vadd.f32 %v2594, %v2605
        %v2610 = vadd.f32 %v2595, %v2605
        %v2611 = vadd.f32 %v2596, %v2605
        %v2612 = vadd.f32 %v2597, %v2605
        %v2613 = vadd.f32 %v2598, %v2605
        %v2614 = vadd.f32 %v2599, %v2605
        %v2615 = vmax.f32 %v2607, 0.0
        %v2616 = vmax.f32 %v2608, 0.0
        %v2617 = vmax.f32 %v2609, 0.0
        %v2618 = vmax.f32 %v2610, 0.0
        %v2619 = vmax.f32 %v2611, 0.0
        %v2620 = vmax.f32 %v2612, 0.0
        %v2621 = vmax.f32 %v2613, 0.0
        %v2622 = vmax.f32 %v2614, 0.0
        %v2623 = vsel %vm1700, %v2615, 0.0
        %v2624 = vsel %vm1700, %v2616, 0.0
        %v2625 = vadd.f32 %v2623, %v2624
        %v2626 = vsel %vm1700, %v2617, 0.0
        %v2627 = vadd.f32 %v2625, %v2626
        %v2628 = vsel %vm1700, %v2618, 0.0
        %v2629 = vadd.f32 %v2627, %v2628
        %v2630 = vsel %vm1700, %v2619, 0.0
        %v2631 = vadd.f32 %v2629, %v2630
        %v2632 = vsel %vm1700, %v2620, 0.0
        %v2633 = vadd.f32 %v2631, %v2632
        %v2634 = vsel %vm1700, %v2621, 0.0
        %v2635 = vadd.f32 %v2633, %v2634
        %v2636 = vsel %vm1700, %v2622, 0.0
        %v2637 = vadd.f32 %v2635, %v2636
        %v2638 = vrot.slane %v2637, 4
        %v2639 = vadd.f32 %v2637, %v2638
        %v2640 = vrot.slane %v2639, 2
        %v2641 = vadd.f32 %v2639, %v2640
        %v2642 = vrot.slane %v2641, 1
        %v2643 = vadd.f32 %v2641, %v2642
        %vm2644 = vcmask 40960
        %2645 = vst.msk [vmem:[%s243] sm:$0x1] %vm2644, %v2643
        %s2646 = sand.u32 %s159, 1
        %s2647 = scalar_lea.sflag [#allocation3], %s2646
        %s2648 = sand.u32 %s159, 1
        %s2649 = scalar_lea.vmem [#allocation2], %s2648
        // Predicated region
        $region45: #{tpu_custom_call.1} parent=43 // pred_check
          %p2650 = pneg %p169
        $region46: #{tpu_custom_call.1} parent=43 // pred_check_branch
          %2652 = sbr.rel (%p2650) target = $region48
        $region47: #{tpu_custom_call.1} parent=43 // pred_region
          %s2654 = ssub.s32 16, 16
          %2655 = vsyncadd %s2647, %s2654
          %s2656 = smul.addr %s20, 16
          %s2657 = scalar_lea.hbm %s6, %s2656
          %s2659 = sshll.u32 %s2649, 4
          %s2660 = int_to_ptr.vmem [resolvable:$true] %s2659
          %2662 = dma.vmem_to_hbm [thread:$0]  %s2660, 16, %s2657, %s2647
        $region48: #{tpu_custom_call.1} parent=43 // pred_fallthru
          _
      $region44: #{tpu_custom_call.1} parent=5 // pred_fallthru
        _
      %p2663 = scmp.le.s32.totalorder 2, %s15
      // Predicated region
      $region49: #{tpu_custom_call.1} parent=5 // pred_check
        %p2664 = pneg %p2663
      $region50: #{tpu_custom_call.1} parent=5 // pred_check_branch
        %2666 = sbr.rel (%p2664) target = $region52
      $region51: #{tpu_custom_call.1} parent=5 // pred_region
        %s2667 = ssub.s32 %s15, 2
        // Predicated region
        $region53: #{tpu_custom_call.1} parent=51 // pred_check
          %p2668 = pneg %p175
        $region54: #{tpu_custom_call.1} parent=51 // pred_check_branch
          %2670 = sbr.rel (%p2668) target = $region56
        $region55: #{tpu_custom_call.1} parent=51 // pred_region
          %s2671 = sand.u32 %s160, 1
          %s2672 = scalar_lea.sflag [#allocation3], %s2671
          %s2673 = sand.u32 %s160, 1
          %s2674 = scalar_lea.vmem [#allocation2], %s2673
          %2675 = dma.done %s2672, 16
        $region56: #{tpu_custom_call.1} parent=51 // pred_fallthru
          _
      $region52: #{tpu_custom_call.1} parent=5 // pred_fallthru
        _
    $region6: #{tpu_custom_call.1} parent=1 // loop_footer
      %s19 = sadd.s32 1, %s15
    $region7: #{tpu_custom_call.1} parent=1 // loop_footer_branch
      %14 = sbr.rel target = $region3
    $region8: #{tpu_custom_call.1} parent=1 // loop_exit
      _
    %2676 = vsyncpa [#allocation3], 1
    %s2677 = scalar_lea.sflag [#allocation3], 1
    %2678 = vsyncpa %s2677, 1

</llo_original>
